<compile_context>
chip_gen: v6e
topology: v6e:2x2x1
jax: 0.10.0
libtpu: 0.0.40
codegen_flags: <defaults>
</compile_context>

<pallas_src>
import numpy as np

import jax
import jax.numpy as jnp
from jax import lax
from jax.experimental import pallas as pl
from jax.experimental.pallas import tpu as pltpu


# ---------------------------------------------------------------------------
# deterministic parameter construction
# ---------------------------------------------------------------------------
class KeyGen:
    def __init__(self, seed):
        self.key = jax.random.PRNGKey(seed)

    def __call__(self):
        self.key, sub = jax.random.split(self.key)
        return sub


def _fold_conv_bn(kg, c_in, c_out, eps=1e-5):
    """Conv1d(k=1)/Linear + BatchNorm (eval) folded into a single (W[in,out], b[1,out])."""
    w = jax.random.normal(kg(), (c_out, c_in), dtype=jnp.float32) / np.sqrt(c_in)
    b = 0.1 * jax.random.normal(kg(), (c_out,), dtype=jnp.float32)
    gamma = 1.0 + 0.1 * jax.random.normal(kg(), (c_out,), dtype=jnp.float32)
    beta = 0.1 * jax.random.normal(kg(), (c_out,), dtype=jnp.float32)
    rmean = 0.1 * jax.random.normal(kg(), (c_out,), dtype=jnp.float32)
    rvar = 1.0 + 0.5 * jax.random.uniform(kg(), (c_out,), dtype=jnp.float32)
    s = gamma / jnp.sqrt(rvar + eps)
    w_f = (w * s[:, None]).T                      # [in, out]
    b_f = ((b - rmean) * s + beta)[None, :]       # [1, out]
    return w_f, b_f


def _linear(kg, c_in, c_out, w_scale=None, b_scale=0.05):
    ws = (1.0 / np.sqrt(c_in)) if w_scale is None else w_scale
    w = ws * jax.random.normal(kg(), (c_out, c_in), dtype=jnp.float32)
    b = b_scale * jax.random.normal(kg(), (c_out,), dtype=jnp.float32)
    return w.T, b[None, :]                        # [in, out], [1, out]


def build_encoder_params(kg):
    """PointNetEncoder(global_feat=True, feature_transform=False, channel=3, use_stn=True)."""
    bf16 = jnp.bfloat16
    enc = {}
    # STN3d convs (conv+bn folded); the big ones stored in bf16 (MXU + DMA savings)
    sw1, sb1 = _fold_conv_bn(kg, 3, 64)
    sw2, sb2 = _fold_conv_bn(kg, 64, 128)
    sw3, sb3 = _fold_conv_bn(kg, 128, 1024)
    enc['stn_conv'] = [sw1, sb1, sw2.astype(bf16), sb2, sw3.astype(bf16), sb3]
    # STN3d fc1/fc2 (+bn4/bn5 folded) and fc3 (plain linear, 3x3 identity folded into bias)
    fw1, fb1 = _fold_conv_bn(kg, 1024, 512)
    fw2, fb2 = _fold_conv_bn(kg, 512, 256)
    w = (0.05 / np.sqrt(256)) * jax.random.normal(kg(), (9, 256), dtype=jnp.float32)
    b = 0.01 * jax.random.normal(kg(), (9,), dtype=jnp.float32) \
        + jnp.eye(3, dtype=jnp.float32).reshape(-1)
    enc['stn_fc'] = [fw1.astype(bf16), fb1, fw2.astype(bf16), fb2, w.T, b[None, :]]
    # main convs conv1/conv2/conv3 (+bn1/bn2/bn3 folded; relu handled in kernel)
    mw1, mb1 = _fold_conv_bn(kg, 3, 64)
    mw2, mb2 = _fold_conv_bn(kg, 64, 128)
    mw3, mb3 = _fold_conv_bn(kg, 128, 1024)
    enc['main_conv'] = [mw1, mb1, mw2.astype(bf16), mb2, mw3.astype(bf16), mb3]
    return enc


def build_flow_params(kg, features, ctx, hidden, num_layers, num_blocks):
    """ConditionalGlow(features, hidden, num_layers, num_blocks, context_features=ctx).

    Returns:
      wctx_all [ctx, (1+nb)*hidden*num_layers] bf16  -- all context projections, concat
      bctx_all [1,   (1+nb)*hidden*num_layers] f32   -- matching biases (bi / bc folded)
      per_layer flat param list (no selection matrices; nets scattered to full features)
      clog [1,1] f32 -- data-independent ActNorm + LU logabsdet
    """
    per_layer = []
    ctx_w_parts, ctx_b_parts = [], []
    const_logdet = jnp.zeros((), jnp.float32)
    mask = np.ones(features, np.float32)
    mask[0::2] = -1.0
    for _ in range(num_layers):
        # --- ActNorm ---
        log_scale = 0.1 * jax.random.normal(kg(), (features,), dtype=jnp.float32)
        shift = 0.1 * jax.random.normal(kg(), (features,), dtype=jnp.float32)
        per_layer += [jnp.exp(log_scale)[None, :], shift[None, :]]
        const_logdet = const_logdet + jnp.sum(log_scale)
        # --- LULinear: y = x @ (L @ U)^T + b ---
        L = jnp.tril(0.1 * jax.random.normal(kg(), (features, features), dtype=jnp.float32), -1) \
            + jnp.eye(features, dtype=jnp.float32)
        diag = jax.nn.softplus(0.1 * jax.random.normal(kg(), (features,), dtype=jnp.float32)) + 1e-3
        U = jnp.triu(0.1 * jax.random.normal(kg(), (features, features), dtype=jnp.float32), 1) \
            + jnp.diag(diag)
        W = L @ U
        lu_b = 0.05 * jax.random.normal(kg(), (features,), dtype=jnp.float32)
        per_layer += [W.T, lu_b[None, :]]
        const_logdet = const_logdet + jnp.sum(jnp.log(diag))
        # --- affine coupling (alternating parity mask) ---
        id_idx = np.where(mask <= 0)[0]
        tr_idx = np.where(mask > 0)[0]
        n_id, n_tr = len(id_idx), len(tr_idx)
        # ResidualNet initial layer: Linear(n_id + ctx -> hidden); identity part scattered
        # to full feature width (zero rows at transform positions), context part goes into
        # the shared concatenated context projection (bias bi folded there).
        wi, bi = _linear(kg, n_id + ctx, hidden)
        wi_full = np.zeros((features, hidden), np.float32)
        wi_full[id_idx] = np.asarray(wi[:n_id])
        per_layer.append(jnp.asarray(wi_full))
        ctx_w_parts.append(wi[n_id:])
        ctx_b_parts.append(bi)
        # residual blocks
        for _ in range(num_blocks):
            wc, bc = _linear(kg, ctx, hidden)                                 # context gate
            w0, b0 = _linear(kg, hidden, hidden)                              # linear_layers[0]
            w1, b1 = _linear(kg, hidden, hidden, w_scale=1e-3, b_scale=1e-3)  # zero-init last
            ctx_w_parts.append(wc)
            ctx_b_parts.append(bc)
            per_layer += [w0, b0, w1, b1]
        # final layer Linear(hidden -> 2*n_tr); cols [:n_tr]=shift, [n_tr:]=unconstr. scale;
        # scattered to [hidden, 2*features] (zero columns at identity positions).
        wf, bf = _linear(kg, hidden, 2 * n_tr)
        wfin_full = np.zeros((hidden, 2 * features), np.float32)
        bfin_full = np.zeros((1, 2 * features), np.float32)
        wfin_full[:, tr_idx] = np.asarray(wf[:, :n_tr])
        wfin_full[:, features + tr_idx] = np.asarray(wf[:, n_tr:])
        bfin_full[:, tr_idx] = np.asarray(bf[:, :n_tr])
        bfin_full[:, features + tr_idx] = np.asarray(bf[:, n_tr:])
        per_layer += [jnp.asarray(wfin_full), jnp.asarray(bfin_full)]
        mask = -mask
    wctx_all = jnp.concatenate(ctx_w_parts, axis=1).astype(jnp.bfloat16)
    bctx_all = jnp.concatenate(ctx_b_parts, axis=1)
    clog = const_logdet.reshape(1, 1).astype(jnp.float32)
    return wctx_all, bctx_all, per_layer, clog


# ---------------------------------------------------------------------------
# PointNetEncoder kernels
# ---------------------------------------------------------------------------
_CHUNK = 256  # lane chunk for the 1024-wide conv3 + max-pool epilogue


def stn_conv_kernel(pc_ref, w1, b1, w2, b2, w3, b3, out_ref):
    x = pc_ref[0]                                                          # [N, 3]
    h = jnp.maximum(jnp.dot(x, w1[...], preferred_element_type=jnp.float32) + b1[...], 0.0)
    h = jnp.maximum(
        jnp.dot(h.astype(jnp.bfloat16), w2[...], preferred_element_type=jnp.float32) + b2[...],
        0.0)
    hb = h.astype(jnp.bfloat16)                                            # [N, 128]
    parts = []
    for c in range(0, 1024, _CHUNK):                                       # chunked conv3+pool
        hc = (jnp.dot(hb, w3[:, c:c + _CHUNK], preferred_element_type=jnp.float32)
              + b3[:, c:c + _CHUNK])
        parts.append(jnp.max(jnp.maximum(hc, 0.0), axis=0, keepdims=True))
    out_ref[0] = jnp.concatenate(parts, axis=1)                            # [1, 1024]


def stn_fc_kernel(feat_ref, fw1, fb1, fw2, fb2, fw3, fb3, out_ref):
    g = feat_ref[...]                                                      # [B, 1024]
    g = jnp.maximum(
        jnp.dot(g.astype(jnp.bfloat16), fw1[...], preferred_element_type=jnp.float32) + fb1[...],
        0.0)
    g = jnp.maximum(
        jnp.dot(g.astype(jnp.bfloat16), fw2[...], preferred_element_type=jnp.float32) + fb2[...],
        0.0)
    out_ref[...] = jnp.dot(g, fw3[...], preferred_element_type=jnp.float32) + fb3[...]  # [B, 9]


def main_conv_kernel(pc_ref, t9_ref, w1, b1, w2, b2, w3, b3, out_ref):
    x = pc_ref[0]                                                          # [N, 3]
    t9 = t9_ref[0]                                                         # [1, 9]
    # x @ trans with trans = t9.reshape(3, 3), expanded to avoid an in-kernel reshape
    xt = (x[:, 0:1] * t9[:, 0:3]
          + x[:, 1:2] * t9[:, 3:6]
          + x[:, 2:3] * t9[:, 6:9])                                        # [N, 3]
    h = jnp.maximum(jnp.dot(xt, w1[...], preferred_element_type=jnp.float32) + b1[...], 0.0)
    h = jnp.maximum(
        jnp.dot(h.astype(jnp.bfloat16), w2[...], preferred_element_type=jnp.float32) + b2[...],
        0.0)
    hb = h.astype(jnp.bfloat16)                                            # [N, 128]
    parts = []
    for c in range(0, 1024, _CHUNK):                                       # bn3, no relu
        hc = (jnp.dot(hb, w3[:, c:c + _CHUNK], preferred_element_type=jnp.float32)
              + b3[:, c:c + _CHUNK])
        parts.append(jnp.max(hc, axis=0, keepdims=True))
    out_ref[0] = jnp.concatenate(parts, axis=1)                            # [1, 1024]


def _const_index_map(nd):
    return lambda b: (0,) * nd


def pointnet_encode(pc, enc):
    B, N, _ = pc.shape

    def conv_call(kernel, extra_inputs, extra_specs, params):
        in_specs = [pl.BlockSpec((1, N, 3), lambda b: (b, 0, 0))] + list(extra_specs)
        for w in params:
            in_specs.append(pl.BlockSpec(w.shape, _const_index_map(w.ndim)))
        return pl.pallas_call(
            kernel,
            out_shape=jax.ShapeDtypeStruct((B, 1, 1024), jnp.float32),
            grid=(B,),
            in_specs=in_specs,
            out_specs=pl.BlockSpec((1, 1, 1024), lambda b: (b, 0, 0)),
            compiler_params=pltpu.CompilerParams(
                dimension_semantics=("parallel",),          # batch is independent (v7x 2 TCs)
                vmem_limit_bytes=24 * 1024 * 1024),         # well under v7x's 64 MiB physical
        )(pc, *extra_inputs, *params)

    # Pass 1: STN conv trunk + max-pool (per batch element)
    stn_feat = conv_call(stn_conv_kernel, [], [], enc['stn_conv']).reshape(B, 1024)

    # Pass 2: STN FC trunk batched over B (weight push amortized over the batch)
    t9 = pl.pallas_call(
        stn_fc_kernel,
        out_shape=jax.ShapeDtypeStruct((B, 9), jnp.float32),
        compiler_params=pltpu.CompilerParams(vmem_limit_bytes=16 * 1024 * 1024),
    )(stn_feat, *enc['stn_fc'])
    t9 = t9.reshape(B, 1, 9)

    # Pass 3: apply input transform + main conv trunk + max-pool
    feat = conv_call(main_conv_kernel, [t9],
                     [pl.BlockSpec((1, 1, 9), lambda b: (b, 0, 0))],
                     enc['main_conv'])
    return feat.reshape(B, 1024)


# ---------------------------------------------------------------------------
# ConditionalGlow log_prob kernel (ActNorm -> LULinear -> affine coupling) x L
# ---------------------------------------------------------------------------
def make_flow_kernel(num_layers, num_blocks, features, hidden):
    log2pi = float(np.log(2.0 * np.pi))

    def kernel(*refs):
        x_ref, ctx_ref, clog_ref, wctx_ref, bctx_ref = refs[:5]
        out_ref = refs[-1]
        it = iter(refs[5:-1])
        nx = lambda: next(it)

        x = x_ref[...]                                                     # [B, F]
        ctx = ctx_ref[...]                                                 # [B, ctx]
        B = x.shape[0]

        # Single fused context projection for ALL layers/blocks (bf16 x bf16, f32 acc).
        ctx_proj = (jnp.dot(ctx.astype(jnp.bfloat16), wctx_ref[...],
                            preferred_element_type=jnp.float32) + bctx_ref[...])

        lad = jnp.zeros((B, 1), jnp.float32)
        lane = lax.broadcasted_iota(jnp.int32, (1, features), 1)

        for l in range(num_layers):
            # transform positions: odd lanes on even layers, even lanes on odd layers
            tr_mask = (lane % 2) == (1 if l % 2 == 0 else 0)               # [1, F] bool

            # ActNorm (log_scale sum is data independent -> folded into clog_ref)
            an_scale, an_shift = nx(), nx()
            x = x * an_scale[...] + an_shift[...]

            # LULinear
            lu_w, lu_b = nx(), nx()
            x = jnp.dot(x, lu_w[...], preferred_element_type=jnp.float32) + lu_b[...]

            # Affine coupling: ResidualNet(identity_split, context).  wi_full has zero rows
            # at transform positions, so no explicit split/gather is needed.
            wi_full = nx()
            base = l * (1 + num_blocks) * hidden
            h = (jnp.dot(x, wi_full[...], preferred_element_type=jnp.float32)
                 + ctx_proj[:, base:base + hidden])
            for k in range(num_blocks):
                w0, b0, w1, b1 = nx(), nx(), nx(), nx()
                off = base + (1 + k) * hidden
                gate = jax.nn.sigmoid(ctx_proj[:, off:off + hidden])       # GLU gate
                t = jnp.maximum(h, 0.0)
                t = jnp.dot(t, w0[...], preferred_element_type=jnp.float32) + b0[...]
                t = jnp.maximum(t, 0.0)
                t = jnp.dot(t, w1[...], preferred_element_type=jnp.float32) + b1[...]
                h = h + t * gate

            # final layer: shift / unconstrained scale, already scattered to full width
            wfin, bfin = nx(), nx()
            fin = jnp.dot(h, wfin[...], preferred_element_type=jnp.float32) + bfin[...]
            shift = jnp.where(tr_mask, fin[:, :features], 0.0)
            scale = jax.nn.sigmoid(fin[:, features:] + 2.0) + 1e-3
            scale = jnp.where(tr_mask, scale, 1.0)                         # identity lanes pass
            x = x * scale + shift
            lad = lad + jnp.sum(jnp.log(scale), axis=1, keepdims=True)

        # StandardNormal([features]).log_prob(noise) + total logabsdet
        log_prob = (-0.5 * jnp.sum(x * x, axis=1, keepdims=True)
                    - 0.5 * features * log2pi
                    + lad + clog_ref[...])
        out_ref[...] = -log_prob                                           # nll

    return kernel


def flow_nll(gt, feat, wctx_all, bctx_all, layer_params, clog,
             num_layers, num_blocks, features, hidden):
    B = gt.shape[0]
    kernel = make_flow_kernel(num_layers, num_blocks, features, hidden)
    nll = pl.pallas_call(
        kernel,
        out_shape=jax.ShapeDtypeStruct((B, 1), jnp.float32),
        compiler_params=pltpu.CompilerParams(vmem_limit_bytes=16 * 1024 * 1024),
    )(gt, feat, clog, wctx_all, bctx_all, *layer_params)
    return nll[:, 0]


# ---------------------------------------------------------------------------
# DexGlowNet.forward (rotation_net / contact_net are None)
# ---------------------------------------------------------------------------
def dexglownet_forward(dic, enc, flow_params, num_layers, num_blocks, features, hidden):
    if 'canon_translation' not in dic:
        return {}
    wctx_all, bctx_all, layer_params, clog = flow_params
    pc = dic['canon_obj_pc']                                               # [B, N, 3]
    # Glow.to_flow: cat([gt_trans, gt_qpos], dim=-1) -> [B, 25]
    gt = jnp.concatenate([dic['canon_translation'], dic['hand_qpos']], axis=-1).astype(jnp.float32)
    feat = pointnet_encode(pc.astype(jnp.float32), enc)                    # [B, 1024]
    nll = flow_nll(gt, feat, wctx_all, bctx_all, layer_params, clog,
                   num_layers, num_blocks, features, hidden)
    return {
        'nll': nll,                                                        # [B]
        'cmap_loss': jnp.zeros((pc.shape[0],), pc.dtype),                  # [B] (no contact_net)
    }


# ---------------------------------------------------------------------------
if __name__ == "__main__":
    B, N = 2, 128
    FEATURES = 25      # cfg flow.points (22 qpos) + 3 translation
    CTX = 1024         # PointNet global feature dim == cfg flow.feature_dim
    HIDDEN = 64        # cfg flow.hidden_dim (small for the demo)
    NUM_LAYERS = 2     # cfg flow.layer
    NUM_BLOCKS = 2     # cfg flow.block

    kg = KeyGen(0)
    enc = build_encoder_params(kg)
    flow_params = build_flow_params(kg, FEATURES, CTX, HIDDEN, NUM_LAYERS, NUM_BLOCKS)

    dk = jax.random.PRNGKey(0)
    k1, k2, k3 = jax.random.split(dk, 3)
    dic = {
        'canon_obj_pc': jax.random.normal(k1, (B, N, 3), dtype=jnp.float32),
        'canon_translation': 0.1 * jax.random.normal(k2, (B, 3), dtype=jnp.float32),
        'hand_qpos': 0.1 * jax.random.normal(k3, (B, 22), dtype=jnp.float32),
    }

    out = dexglownet_forward(dic, enc, flow_params, NUM_LAYERS, NUM_BLOCKS, FEATURES, HIDDEN)
    jax.block_until_ready(out)

    assert out['nll'].shape == (B,) and out['nll'].dtype == jnp.float32
    assert out['cmap_loss'].shape == (B,)
    assert bool(jnp.all(jnp.isfinite(out['nll'])))
    print("KERNEL_OK")
</pallas_src>

<mosaic_0001>
module attributes {stable_mosaic.version = 11 : i64} {
  func.func @stn_conv_kernel(%arg0: i32, %arg1: memref<1x128x3xf32, #tpu.memory_space<vmem>>, %arg2: memref<3x64xf32, #tpu.memory_space<vmem>>, %arg3: memref<1x64xf32, #tpu.memory_space<vmem>>, %arg4: memref<64x128xbf16, #tpu.memory_space<vmem>>, %arg5: memref<1x128xf32, #tpu.memory_space<vmem>>, %arg6: memref<128x1024xbf16, #tpu.memory_space<vmem>>, %arg7: memref<1x1024xf32, #tpu.memory_space<vmem>>, %arg8: memref<1x1x1024xf32, #tpu.memory_space<vmem>>) attributes {dimension_semantics = [#tpu.dimension_semantics<parallel>], iteration_bounds = array<i64: 2>, scalar_prefetch = 0 : i64, scratch_operands = 0 : i64, tpu.core_type = #tpu.core_type<tc>, window_params = [{transform_indices = @transform_0, window_bounds = array<i64: 1, 128, 3>}, {pipeline_mode = #tpu.pipeline_mode<synchronous>, transform_indices = @transform_1, window_bounds = array<i64: 3, 64>}, {pipeline_mode = #tpu.pipeline_mode<synchronous>, transform_indices = @transform_2, window_bounds = array<i64: 1, 64>}, {pipeline_mode = #tpu.pipeline_mode<synchronous>, transform_indices = @transform_3, window_bounds = array<i64: 64, 128>}, {pipeline_mode = #tpu.pipeline_mode<synchronous>, transform_indices = @transform_4, window_bounds = array<i64: 1, 128>}, {pipeline_mode = #tpu.pipeline_mode<synchronous>, transform_indices = @transform_5, window_bounds = array<i64: 128, 1024>}, {pipeline_mode = #tpu.pipeline_mode<synchronous>, transform_indices = @transform_6, window_bounds = array<i64: 1, 1024>}, {transform_indices = @transform_7, window_bounds = array<i64: 1, 1, 1024>}]} {
    %c0 = arith.constant 0 : index
    %c0_0 = arith.constant 0 : index
    %c0_1 = arith.constant 0 : index
    %0 = vector.load %arg1[%c0, %c0_0, %c0_1] : memref<1x128x3xf32, #tpu.memory_space<vmem>>, vector<1x128x3xf32>
    %1 = vector.shape_cast %0 : vector<1x128x3xf32> to vector<128x3xf32>
    %c0_2 = arith.constant 0 : index
    %c0_3 = arith.constant 0 : index
    %2 = vector.load %arg2[%c0_2, %c0_3] : memref<3x64xf32, #tpu.memory_space<vmem>>, vector<3x64xf32>
    %cst = arith.constant dense<0.000000e+00> : vector<128x64xf32>
    %3 = tpu.matmul %1, %2, %cst {dimension_numbers = #tpu.dot_dimension_numbers<[1], [0], [0], [1], [0, 0, 1, 1], [], []>} : vector<128x3xf32>, vector<3x64xf32>, vector<128x64xf32> -> vector<128x64xf32>
    %c0_4 = arith.constant 0 : index
    %c0_5 = arith.constant 0 : index
    %4 = vector.load %arg3[%c0_4, %c0_5] : memref<1x64xf32, #tpu.memory_space<vmem>>, vector<1x64xf32>
    %5 = vector.broadcast %4 : vector<1x64xf32> to vector<128x64xf32>
    %6 = arith.addf %3, %5 : vector<128x64xf32>
    %cst_6 = arith.constant 0.000000e+00 : f32
    %7 = vector.broadcast %cst_6 : f32 to vector<128x64xf32>
    %8 = arith.maximumf %6, %7 : vector<128x64xf32>
    %9 = arith.truncf %8 : vector<128x64xf32> to vector<128x64xbf16>
    %c0_7 = arith.constant 0 : index
    %c0_8 = arith.constant 0 : index
    %10 = vector.load %arg4[%c0_7, %c0_8] : memref<64x128xbf16, #tpu.memory_space<vmem>>, vector<64x128xbf16>
    %cst_9 = arith.constant dense<0.000000e+00> : vector<128x128xf32>
    %11 = tpu.matmul %9, %10, %cst_9 {dimension_numbers = #tpu.dot_dimension_numbers<[1], [0], [0], [1], [0, 0, 1, 1], [], []>} : vector<128x64xbf16>, vector<64x128xbf16>, vector<128x128xf32> -> vector<128x128xf32>
    %c0_10 = arith.constant 0 : index
    %c0_11 = arith.constant 0 : index
    %12 = vector.load %arg5[%c0_10, %c0_11] : memref<1x128xf32, #tpu.memory_space<vmem>>, vector<1x128xf32>
    %13 = vector.broadcast %12 : vector<1x128xf32> to vector<128x128xf32>
    %14 = arith.addf %11, %13 : vector<128x128xf32>
    %cst_12 = arith.constant 0.000000e+00 : f32
    %15 = vector.broadcast %cst_12 : f32 to vector<128x128xf32>
    %16 = arith.maximumf %14, %15 : vector<128x128xf32>
    %17 = arith.truncf %16 : vector<128x128xf32> to vector<128x128xbf16>
    %c0_13 = arith.constant 0 : index
    %c0_14 = arith.constant 0 : index
    %18 = vector.load %arg6[%c0_13, %c0_14] : memref<128x1024xbf16, #tpu.memory_space<vmem>>, vector<128x256xbf16>
    %cst_15 = arith.constant dense<0.000000e+00> : vector<128x256xf32>
    %19 = tpu.matmul %17, %18, %cst_15 {dimension_numbers = #tpu.dot_dimension_numbers<[1], [0], [0], [1], [0, 0, 1, 1], [], []>} : vector<128x128xbf16>, vector<128x256xbf16>, vector<128x256xf32> -> vector<128x256xf32>
    %c0_16 = arith.constant 0 : index
    %c0_17 = arith.constant 0 : index
    %20 = vector.load %arg7[%c0_16, %c0_17] : memref<1x1024xf32, #tpu.memory_space<vmem>>, vector<1x256xf32>
    %21 = vector.broadcast %20 : vector<1x256xf32> to vector<128x256xf32>
    %22 = arith.addf %19, %21 : vector<128x256xf32>
    %cst_18 = arith.constant 0.000000e+00 : f32
    %23 = vector.broadcast %cst_18 : f32 to vector<128x256xf32>
    %24 = arith.maximumf %22, %23 : vector<128x256xf32>
    %cst_19 = arith.constant dense<0xFF800000> : vector<256xf32>
    %25 = vector.multi_reduction <maximumf>, %24, %cst_19 [0] : vector<128x256xf32> to vector<256xf32>
    %26 = vector.shape_cast %25 : vector<256xf32> to vector<1x256xf32>
    %c0_20 = arith.constant 0 : index
    %c256 = arith.constant 256 : index
    %27 = vector.load %arg6[%c0_20, %c256] : memref<128x1024xbf16, #tpu.memory_space<vmem>>, vector<128x256xbf16>
    %cst_21 = arith.constant dense<0.000000e+00> : vector<128x256xf32>
    %28 = tpu.matmul %17, %27, %cst_21 {dimension_numbers = #tpu.dot_dimension_numbers<[1], [0], [0], [1], [0, 0, 1, 1], [], []>} : vector<128x128xbf16>, vector<128x256xbf16>, vector<128x256xf32> -> vector<128x256xf32>
    %c0_22 = arith.constant 0 : index
    %c256_23 = arith.constant 256 : index
    %29 = vector.load %arg7[%c0_22, %c256_23] : memref<1x1024xf32, #tpu.memory_space<vmem>>, vector<1x256xf32>
    %30 = vector.broadcast %29 : vector<1x256xf32> to vector<128x256xf32>
    %31 = arith.addf %28, %30 : vector<128x256xf32>
    %cst_24 = arith.constant 0.000000e+00 : f32
    %32 = vector.broadcast %cst_24 : f32 to vector<128x256xf32>
    %33 = arith.maximumf %31, %32 : vector<128x256xf32>
    %cst_25 = arith.constant dense<0xFF800000> : vector<256xf32>
    %34 = vector.multi_reduction <maximumf>, %33, %cst_25 [0] : vector<128x256xf32> to vector<256xf32>
    %35 = vector.shape_cast %34 : vector<256xf32> to vector<1x256xf32>
    %c0_26 = arith.constant 0 : index
    %c512 = arith.constant 512 : index
    %36 = vector.load %arg6[%c0_26, %c512] : memref<128x1024xbf16, #tpu.memory_space<vmem>>, vector<128x256xbf16>
    %cst_27 = arith.constant dense<0.000000e+00> : vector<128x256xf32>
    %37 = tpu.matmul %17, %36, %cst_27 {dimension_numbers = #tpu.dot_dimension_numbers<[1], [0], [0], [1], [0, 0, 1, 1], [], []>} : vector<128x128xbf16>, vector<128x256xbf16>, vector<128x256xf32> -> vector<128x256xf32>
    %c0_28 = arith.constant 0 : index
    %c512_29 = arith.constant 512 : index
    %38 = vector.load %arg7[%c0_28, %c512_29] : memref<1x1024xf32, #tpu.memory_space<vmem>>, vector<1x256xf32>
    %39 = vector.broadcast %38 : vector<1x256xf32> to vector<128x256xf32>
    %40 = arith.addf %37, %39 : vector<128x256xf32>
    %cst_30 = arith.constant 0.000000e+00 : f32
    %41 = vector.broadcast %cst_30 : f32 to vector<128x256xf32>
    %42 = arith.maximumf %40, %41 : vector<128x256xf32>
    %cst_31 = arith.constant dense<0xFF800000> : vector<256xf32>
    %43 = vector.multi_reduction <maximumf>, %42, %cst_31 [0] : vector<128x256xf32> to vector<256xf32>
    %44 = vector.shape_cast %43 : vector<256xf32> to vector<1x256xf32>
    %c0_32 = arith.constant 0 : index
    %c768 = arith.constant 768 : index
    %45 = vector.load %arg6[%c0_32, %c768] : memref<128x1024xbf16, #tpu.memory_space<vmem>>, vector<128x256xbf16>
    %cst_33 = arith.constant dense<0.000000e+00> : vector<128x256xf32>
    %46 = tpu.matmul %17, %45, %cst_33 {dimension_numbers = #tpu.dot_dimension_numbers<[1], [0], [0], [1], [0, 0, 1, 1], [], []>} : vector<128x128xbf16>, vector<128x256xbf16>, vector<128x256xf32> -> vector<128x256xf32>
    %c0_34 = arith.constant 0 : index
    %c768_35 = arith.constant 768 : index
    %47 = vector.load %arg7[%c0_34, %c768_35] : memref<1x1024xf32, #tpu.memory_space<vmem>>, vector<1x256xf32>
    %48 = vector.broadcast %47 : vector<1x256xf32> to vector<128x256xf32>
    %49 = arith.addf %46, %48 : vector<128x256xf32>
    %cst_36 = arith.constant 0.000000e+00 : f32
    %50 = vector.broadcast %cst_36 : f32 to vector<128x256xf32>
    %51 = arith.maximumf %49, %50 : vector<128x256xf32>
    %cst_37 = arith.constant dense<0xFF800000> : vector<256xf32>
    %52 = vector.multi_reduction <maximumf>, %51, %cst_37 [0] : vector<128x256xf32> to vector<256xf32>
    %53 = vector.shape_cast %52 : vector<256xf32> to vector<1x256xf32>
    %54 = tpu.concatenate %26, %35, %44, %53 in 1 : vector<1x256xf32>, vector<1x256xf32>, vector<1x256xf32>, vector<1x256xf32> -> vector<1x1024xf32>
    %c0_38 = arith.constant 0 : index
    %c0_39 = arith.constant 0 : index
    %c0_40 = arith.constant 0 : index
    %55 = vector.load %arg8[%c0_38, %c0_39, %c0_40] : memref<1x1x1024xf32, #tpu.memory_space<vmem>>, vector<1x1x1024xf32>
    %56 = vector.shape_cast %55 : vector<1x1x1024xf32> to vector<1x1024xf32>
    %57 = vector.shape_cast %54 : vector<1x1024xf32> to vector<1x1x1024xf32>
    tpu.vector_store %arg8[%c0_38, %c0_39, %c0_40], %57 {strides = array<i32>} : memref<1x1x1024xf32, #tpu.memory_space<vmem>>, vector<1x1x1024xf32>,
    return
  }
  func.func @transform_0(%arg0: i32) -> (i32, i32, i32) {
    %c0_i32 = arith.constant 0 : i32
    %c0_i32_0 = arith.constant 0 : i32
    %c0_i32_1 = arith.constant 0 : i32
    return %arg0, %c0_i32, %c0_i32_0 : i32, i32, i32
  }
  func.func @transform_1(%arg0: i32) -> (i32, i32) {
    %c0_i32 = arith.constant 0 : i32
    %c0_i32_0 = arith.constant 0 : i32
    %c0_i32_1 = arith.constant 0 : i32
    return %c0_i32, %c0_i32_0 : i32, i32
  }
  func.func @transform_2(%arg0: i32) -> (i32, i32) {
    %c0_i32 = arith.constant 0 : i32
    %c0_i32_0 = arith.constant 0 : i32
    %c0_i32_1 = arith.constant 0 : i32
    return %c0_i32, %c0_i32_0 : i32, i32
  }
  func.func @transform_3(%arg0: i32) -> (i32, i32) {
    %c0_i32 = arith.constant 0 : i32
    %c0_i32_0 = arith.constant 0 : i32
    %c0_i32_1 = arith.constant 0 : i32
    return %c0_i32, %c0_i32_0 : i32, i32
  }
  func.func @transform_4(%arg0: i32) -> (i32, i32) {
    %c0_i32 = arith.constant 0 : i32
    %c0_i32_0 = arith.constant 0 : i32
    %c0_i32_1 = arith.constant 0 : i32
    return %c0_i32, %c0_i32_0 : i32, i32
  }
  func.func @transform_5(%arg0: i32) -> (i32, i32) {
    %c0_i32 = arith.constant 0 : i32
    %c0_i32_0 = arith.constant 0 : i32
    %c0_i32_1 = arith.constant 0 : i32
    return %c0_i32, %c0_i32_0 : i32, i32
  }
  func.func @transform_6(%arg0: i32) -> (i32, i32) {
    %c0_i32 = arith.constant 0 : i32
    %c0_i32_0 = arith.constant 0 : i32
    %c0_i32_1 = arith.constant 0 : i32
    return %c0_i32, %c0_i32_0 : i32, i32
  }
  func.func @transform_7(%arg0: i32) -> (i32, i32, i32) {
    %c0_i32 = arith.constant 0 : i32
    %c0_i32_0 = arith.constant 0 : i32
    %c0_i32_1 = arith.constant 0 : i32
    return %arg0, %c0_i32, %c0_i32_0 : i32, i32, i32
  }
}

</mosaic_0001>

<llo_original>
// kernel: tpu_custom_call.1
$region0: #{tpu_custom_call.1}
  #allocation0 [shape = 'u32[]', space=smem, size = 0x4, offset = 0x4, fixed_abs, tag = 'smem constant byte address 0x4 - core index']
  #allocation1 [shape = 'u32[144,128]{1,0:T(1,128)}', space=vmem, size = 0x12000, scoped, tag = 'internal scratch']
  %s0 = inlined_call_operand.vmem [shape: f32[2,128,3], index: 0, kind: input, shape index: {}]
  %s1 = inlined_call_operand.vmem [shape: f32[3,64], index: 1, kind: input, shape index: {}]
  %s2 = inlined_call_operand.vmem [shape: f32[1,64], index: 2, kind: input, shape index: {}]
  %s3 = inlined_call_operand.vmem [shape: bf16[64,128], index: 3, kind: input, shape index: {}]
  %s4 = inlined_call_operand.vmem [shape: f32[1,128], index: 4, kind: input, shape index: {}]
  %s5 = inlined_call_operand.hbm [shape: bf16[128,1024], index: 5, kind: input, shape index: {}]
  %s6 = inlined_call_operand.vmem [shape: f32[1,1024], index: 6, kind: input, shape index: {}]
  %s7 = inlined_call_operand.hbm [shape: f32[2,1,1024], index: 7, kind: output, shape index: {}]
  %s8 = sld [smem:[#allocation0]]
  $region65: #{tpu_custom_call.1} parent=0
    _
  %s10 = ssub.s32 1, %s8
  %s11 = scalar_select 0, %s10, %s8
  $region1: #{tpu_custom_call.1} parent=0
    #allocation2 [shape = 'u8[262144]{0}', space=vmem, size = 0x40000, scoped, tag = 'input window, operand 5, single buffered']
    #allocation3 [shape = 's32[2]{0}', space=sflag, size = 0x8, scoped, tag = 'scoped memory for tpu_custom_call.1']
    #allocation4 [shape = 's32[2]{0}', space=sflag, size = 0x8, scoped, tag = 'scoped memory for tpu_custom_call.1']
    #allocation5 [shape = 'u8[8192]{0}', space=vmem, size = 0x2000, scoped, tag = 'output window, operand 0']
    %12 = vsyncpa [#allocation3], 0
    %13 = vsyncpa [#allocation4], 0
    %s14 = scalar_lea.sflag [#allocation4], 1
    %15 = vsyncpa %s14, 0
    loop: start=0, step=1, limit=4
    $region2: #{tpu_custom_call.1} parent=1 // loop_pre_header
      _
    $region3: #{tpu_custom_call.1} parent=1 // loop_header
      %s17 = sphi 0, %s21
      %p18 = scmp.ge.s32.totalorder %s17, 4
      %s27 = sphi 0, %s29
      %s30 = sphi 0, %s27
      %s31 = sphi 0, %s30
      %s47 = sphi 0, %s31
      %s51 = sphi 0, %s51
      %s53 = sphi 0, %s51
      %s54 = sphi 0, %s53
      %s68 = sphi 0, %s54
      %s72 = sphi 0, %s72
      %s74 = sphi 0, %s72
      %s75 = sphi 0, %s74
      %s89 = sphi 0, %s75
      %s93 = sphi 0, %s93
      %s95 = sphi 0, %s93
      %s96 = sphi 0, %s95
      %s110 = sphi 0, %s96
      %s114 = sphi 0, %s114
      %s116 = sphi 0, %s114
      %s117 = sphi 0, %s116
      %s131 = sphi 0, %s117
      %s135 = sphi 0, %s135
      %s137 = sphi 0, %s135
      %s138 = sphi 0, %s137
      %s152 = sphi 0, %s138
      %s156 = sphi 0, %s156
      %s158 = sphi 0, %s156
      %s159 = sphi 0, %s158
      %s173 = sphi 0, %s159
      %s179 = sphi 0, %s181
      %s182 = sphi 0, %s179
      %s183 = sphi 0, %s182
      %s199 = sphi 0, %s183
    $region4: #{tpu_custom_call.1} parent=1 // loop_header_branch
      %20 = sbr.rel (%p18) target = $region8
    $region5: #{tpu_custom_call.1} parent=1 // loop_body
      %s22 = ssub.s32 %s17, 1
      %s23 = ssub.s32 %s17, 2
      %s24 = sadd.s32 %s17, 1
      %s25 = ssub.s32 %s17, %s24
      %p26 = scmp.eq.s32.totalorder %s25, 0
      %s28 = sadd.s32 %s27, 1
      %s29 = scalar_select %p26, %s27, %s28
      %p32 = pneg %p26
      %p33 = scmp.eq.s32.totalorder %s17, 1
      %p34 = por %p32, %p33
      %p35 = scmp.ne.s32.totalorder %s27, %s30
      %p36 = scmp.eq.s32.totalorder %s17, 0
      %p37 = por %p35, %p36
      %p38 = scmp.ne.s32.totalorder %s27, %s30
      %p39 = scmp.eq.s32.totalorder %s22, 1
      %p40 = por %p38, %p39
      %p41 = scmp.ne.s32.totalorder %s30, %s31
      %p42 = scmp.eq.s32.totalorder %s22, 0
      %p43 = por %p41, %p42
      %p44 = scmp.ne.s32.totalorder %s30, %s31
      %p45 = scmp.eq.s32.totalorder %s23, 1
      %p46 = por %p44, %p45
      %p48 = scmp.ne.s32.totalorder %s31, %s47
      %p49 = scmp.eq.s32.totalorder %s23, 0
      %p50 = por %p48, %p49
      %s52 = sadd.s32 %s51, 1
      %p55 = scmp.eq.s32.totalorder %s17, 1
      %p56 = scmp.ne.s32.totalorder %s51, %s53
      %p57 = scmp.eq.s32.totalorder %s17, 0
      %p58 = por %p56, %p57
      %p59 = scmp.ne.s32.totalorder %s51, %s53
      %p60 = scmp.eq.s32.totalorder %s22, 1
      %p61 = por %p59, %p60
      %p62 = scmp.ne.s32.totalorder %s53, %s54
      %p63 = scmp.eq.s32.totalorder %s22, 0
      %p64 = por %p62, %p63
      %p65 = scmp.ne.s32.totalorder %s53, %s54
      %p66 = scmp.eq.s32.totalorder %s23, 1
      %p67 = por %p65, %p66
      %p69 = scmp.ne.s32.totalorder %s54, %s68
      %p70 = scmp.eq.s32.totalorder %s23, 0
      %p71 = por %p69, %p70
      %s73 = sadd.s32 %s72, 1
      %p76 = scmp.eq.s32.totalorder %s17, 1
      %p77 = scmp.ne.s32.totalorder %s72, %s74
      %p78 = scmp.eq.s32.totalorder %s17, 0
      %p79 = por %p77, %p78
      %p80 = scmp.ne.s32.totalorder %s72, %s74
      %p81 = scmp.eq.s32.totalorder %s22, 1
      %p82 = por %p80, %p81
      %p83 = scmp.ne.s32.totalorder %s74, %s75
      %p84 = scmp.eq.s32.totalorder %s22, 0
      %p85 = por %p83, %p84
      %p86 = scmp.ne.s32.totalorder %s74, %s75
      %p87 = scmp.eq.s32.totalorder %s23, 1
      %p88 = por %p86, %p87
      %p90 = scmp.ne.s32.totalorder %s75, %s89
      %p91 = scmp.eq.s32.totalorder %s23, 0
      %p92 = por %p90, %p91
      %s94 = sadd.s32 %s93, 1
      %p97 = scmp.eq.s32.totalorder %s17, 1
      %p98 = scmp.ne.s32.totalorder %s93, %s95
      %p99 = scmp.eq.s32.totalorder %s17, 0
      %p100 = por %p98, %p99
      %p101 = scmp.ne.s32.totalorder %s93, %s95
      %p102 = scmp.eq.s32.totalorder %s22, 1
      %p103 = por %p101, %p102
      %p104 = scmp.ne.s32.totalorder %s95, %s96
      %p105 = scmp.eq.s32.totalorder %s22, 0
      %p106 = por %p104, %p105
      %p107 = scmp.ne.s32.totalorder %s95, %s96
      %p108 = scmp.eq.s32.totalorder %s23, 1
      %p109 = por %p107, %p108
      %p111 = scmp.ne.s32.totalorder %s96, %s110
      %p112 = scmp.eq.s32.totalorder %s23, 0
      %p113 = por %p111, %p112
      %s115 = sadd.s32 %s114, 1
      %p118 = scmp.eq.s32.totalorder %s17, 1
      %p119 = scmp.ne.s32.totalorder %s114, %s116
      %p120 = scmp.eq.s32.totalorder %s17, 0
      %p121 = por %p119, %p120
      %p122 = scmp.ne.s32.totalorder %s114, %s116
      %p123 = scmp.eq.s32.totalorder %s22, 1
      %p124 = por %p122, %p123
      %p125 = scmp.ne.s32.totalorder %s116, %s117
      %p126 = scmp.eq.s32.totalorder %s22, 0
      %p127 = por %p125, %p126
      %p128 = scmp.ne.s32.totalorder %s116, %s117
      %p129 = scmp.eq.s32.totalorder %s23, 1
      %p130 = por %p128, %p129
      %p132 = scmp.ne.s32.totalorder %s117, %s131
      %p133 = scmp.eq.s32.totalorder %s23, 0
      %p134 = por %p132, %p133
      %s136 = sadd.s32 %s135, 1
      %p139 = scmp.eq.s32.totalorder %s17, 1
      %p140 = scmp.ne.s32.totalorder %s135, %s137
      %p141 = scmp.eq.s32.totalorder %s17, 0
      %p142 = por %p140, %p141
      %p143 = scmp.ne.s32.totalorder %s135, %s137
      %p144 = scmp.eq.s32.totalorder %s22, 1
      %p145 = por %p143, %p144
      %p146 = scmp.ne.s32.totalorder %s137, %s138
      %p147 = scmp.eq.s32.totalorder %s22, 0
      %p148 = por %p146, %p147
      %p149 = scmp.ne.s32.totalorder %s137, %s138
      %p150 = scmp.eq.s32.totalorder %s23, 1
      %p151 = por %p149, %p150
      %p153 = scmp.ne.s32.totalorder %s138, %s152
      %p154 = scmp.eq.s32.totalorder %s23, 0
      %p155 = por %p153, %p154
      %s157 = sadd.s32 %s156, 1
      %p160 = scmp.eq.s32.totalorder %s17, 1
      %p161 = scmp.ne.s32.totalorder %s156, %s158
      %p162 = scmp.eq.s32.totalorder %s17, 0
      %p163 = por %p161, %p162
      %p164 = scmp.ne.s32.totalorder %s156, %s158
      %p165 = scmp.eq.s32.totalorder %s22, 1
      %p166 = por %p164, %p165
      %p167 = scmp.ne.s32.totalorder %s158, %s159
      %p168 = scmp.eq.s32.totalorder %s22, 0
      %p169 = por %p167, %p168
      %p170 = scmp.ne.s32.totalorder %s158, %s159
      %p171 = scmp.eq.s32.totalorder %s23, 1
      %p172 = por %p170, %p171
      %p174 = scmp.ne.s32.totalorder %s159, %s173
      %p175 = scmp.eq.s32.totalorder %s23, 0
      %p176 = por %p174, %p175
      %s177 = ssub.s32 %s17, %s24
      %p178 = scmp.eq.s32.totalorder %s177, 0
      %s180 = sadd.s32 %s179, 1
      %s181 = scalar_select %p178, %s179, %s180
      %p184 = pneg %p178
      %p185 = scmp.eq.s32.totalorder %s17, 1
      %p186 = por %p184, %p185
      %p187 = scmp.ne.s32.totalorder %s179, %s182
      %p188 = scmp.eq.s32.totalorder %s17, 0
      %p189 = por %p187, %p188
      %p190 = scmp.ne.s32.totalorder %s179, %s182
      %p191 = scmp.eq.s32.totalorder %s22, 1
      %p192 = por %p190, %p191
      %p193 = scmp.ne.s32.totalorder %s182, %s183
      %p194 = scmp.eq.s32.totalorder %s22, 0
      %p195 = por %p193, %p194
      %p196 = scmp.ne.s32.totalorder %s182, %s183
      %p197 = scmp.eq.s32.totalorder %s23, 1
      %p198 = por %p196, %p197
      %p200 = scmp.ne.s32.totalorder %s183, %s199
      %p201 = scmp.eq.s32.totalorder %s23, 0
      %p202 = por %p200, %p201
      %p203 = scmp.le.s32.totalorder 1, %s17
      %p204 = scmp.lt.s32.totalorder %s17, 3
      %p205 = pnand %p203, %p204
      %p206 = pneg %p205
      // Predicated region
      $region9: #{tpu_custom_call.1} parent=5 // pred_check
        _
      $region10: #{tpu_custom_call.1} parent=5 // pred_check_branch
        %208 = sbr.rel (%p205) target = $region12
      $region11: #{tpu_custom_call.1} parent=5 // pred_region
        %s209 = ssub.s32 %s17, 1
        // Predicated region
        $region13: #{tpu_custom_call.1} parent=11 // pred_check
          %p210 = pneg %p64
        $region14: #{tpu_custom_call.1} parent=11 // pred_check_branch
          %212 = sbr.rel (%p210) target = $region16
        $region15: #{tpu_custom_call.1} parent=11 // pred_region
          _
        $region16: #{tpu_custom_call.1} parent=11 // pred_fallthru
          _
        // Predicated region
        $region17: #{tpu_custom_call.1} parent=11 // pred_check
          %p213 = pneg %p85
        $region18: #{tpu_custom_call.1} parent=11 // pred_check_branch
          %215 = sbr.rel (%p213) target = $region20
        $region19: #{tpu_custom_call.1} parent=11 // pred_region
          _
        $region20: #{tpu_custom_call.1} parent=11 // pred_fallthru
          _
        // Predicated region
        $region21: #{tpu_custom_call.1} parent=11 // pred_check
          %p216 = pneg %p106
        $region22: #{tpu_custom_call.1} parent=11 // pred_check_branch
          %218 = sbr.rel (%p216) target = $region24
        $region23: #{tpu_custom_call.1} parent=11 // pred_region
          _
        $region24: #{tpu_custom_call.1} parent=11 // pred_fallthru
          _
        // Predicated region
        $region25: #{tpu_custom_call.1} parent=11 // pred_check
          %p219 = pneg %p127
        $region26: #{tpu_custom_call.1} parent=11 // pred_check_branch
          %221 = sbr.rel (%p219) target = $region28
        $region27: #{tpu_custom_call.1} parent=11 // pred_region
          _
        $region28: #{tpu_custom_call.1} parent=11 // pred_fallthru
          _
        // Predicated region
        $region29: #{tpu_custom_call.1} parent=11 // pred_check
          %p222 = pneg %p148
        $region30: #{tpu_custom_call.1} parent=11 // pred_check_branch
          %224 = sbr.rel (%p222) target = $region32
        $region31: #{tpu_custom_call.1} parent=11 // pred_region
          %s226 = ssub.s32 8192, 8192
          %227 = vsyncadd [#allocation3], %s226
          %s228 = sshll.u32 [#allocation2], 4
          %s229 = int_to_ptr.vmem [resolvable:$true] %s228
          %234 = dma.hbm_to_vmem [thread:$0]  %s5, 8192, %s229, [#allocation3], 512, 512, 32
        $region32: #{tpu_custom_call.1} parent=11 // pred_fallthru
          _
        // Predicated region
        $region33: #{tpu_custom_call.1} parent=11 // pred_check
          %p235 = pneg %p169
        $region34: #{tpu_custom_call.1} parent=11 // pred_check_branch
          %237 = sbr.rel (%p235) target = $region36
        $region35: #{tpu_custom_call.1} parent=11 // pred_region
          _
        $region36: #{tpu_custom_call.1} parent=11 // pred_fallthru
          _
      $region12: #{tpu_custom_call.1} parent=5 // pred_fallthru
        _
      %p238 = scmp.lt.s32.totalorder %s17, 2
      // Predicated region
      $region37: #{tpu_custom_call.1} parent=5 // pred_check
        %p239 = pneg %p238
      $region38: #{tpu_custom_call.1} parent=5 // pred_check_branch
        %241 = sbr.rel (%p239) target = $region40
      $region39: #{tpu_custom_call.1} parent=5 // pred_region
        // Predicated region
        $region41: #{tpu_custom_call.1} parent=39 // pred_check
          %p242 = pneg %p37
        $region42: #{tpu_custom_call.1} parent=39 // pred_check_branch
          %244 = sbr.rel (%p242) target = $region44
        $region43: #{tpu_custom_call.1} parent=39 // pred_region
          %p245 = scmp.lt.s32.totalorder %s17, 1
          %s246 = scalar_select %p245, %s17, 1
          %s247 = smul.addr %s246, 16
          %s248 = smul.addr %s247, 8
          %s249 = scalar_lea.vmem %s0, %s248
        $region44: #{tpu_custom_call.1} parent=39 // pred_fallthru
          _
      $region40: #{tpu_custom_call.1} parent=5 // pred_fallthru
        _
      %p250 = scmp.le.s32.totalorder 1, %s17
      %p251 = scmp.lt.s32.totalorder %s17, 3
      %p252 = pnand %p250, %p251
      %p253 = pneg %p252
      // Predicated region
      $region45: #{tpu_custom_call.1} parent=5 // pred_check
        _
      $region46: #{tpu_custom_call.1} parent=5 // pred_check_branch
        %255 = sbr.rel (%p252) target = $region48
      $region47: #{tpu_custom_call.1} parent=5 // pred_region
        %s256 = ssub.s32 %s17, 1
        // Predicated region
        $region49: #{tpu_custom_call.1} parent=47 // pred_check
          %p257 = pneg %p148
        $region50: #{tpu_custom_call.1} parent=47 // pred_check_branch
          %259 = sbr.rel (%p257) target = $region52
        $region51: #{tpu_custom_call.1} parent=47 // pred_region
          %260 = dma.done [#allocation3], 8192
        $region52: #{tpu_custom_call.1} parent=47 // pred_fallthru
          _
        %p261 = scmp.lt.s32.totalorder %s22, 1
        %s262 = scalar_select %p261, %s22, 1
        %s263 = smul.addr %s262, 16
        %s264 = smul.addr %s263, 8
        %s265 = scalar_lea.vmem %s0, %s264
        %p266 = pneg %p43
        %p267 = pneg %p40
        %p268 = pneg %p64
        %p269 = pneg %p61
        %p270 = pneg %p85
        %p271 = pneg %p82
        %p272 = pneg %p106
        %p273 = pneg %p103
        %p274 = pneg %p127
        %p275 = pneg %p124
        %p276 = pneg %p148
        %p277 = pneg %p145
        %p278 = pneg %p169
        %p279 = pneg %p166
        %p280 = pneg %p195
        %p281 = pneg %p192
        %s282 = sand.u32 %s182, 1
        %s283 = scalar_lea.sflag [#allocation4], %s282
        %s284 = sand.u32 %s182, 1
        %s285 = smul.addr %s284, 8
        %s286 = scalar_lea.vmem [#allocation5], %s285
        %p287 = scmp.lt.s32.totalorder %s22, 1
        %s288 = scalar_select %p287, %s22, 1
        %s289 = smul.addr %s288, 16
        %s290 = smul.addr %s289, 8
        %s291 = scalar_lea.vmem %s0, %s290
        %v293 = vld [vmem:[%s291] sm:$0xff]
        %v294 = vld [vmem:[%s291 + $0x8] sm:$0xff]
        %v295 = vld [vmem:[%s291 + $0x10] sm:$0xff]
        %v296 = vld [vmem:[%s291 + $0x18] sm:$0xff]
        %v297 = vld [vmem:[%s291 + $0x20] sm:$0xff]
        %v298 = vld [vmem:[%s291 + $0x28] sm:$0xff]
        %v299 = vld [vmem:[%s291 + $0x30] sm:$0xff]
        %v300 = vld [vmem:[%s291 + $0x38] sm:$0xff]
        %v301 = vld [vmem:[%s291 + $0x40] sm:$0xff]
        %v302 = vld [vmem:[%s291 + $0x48] sm:$0xff]
        %v303 = vld [vmem:[%s291 + $0x50] sm:$0xff]
        %v304 = vld [vmem:[%s291 + $0x58] sm:$0xff]
        %v305 = vld [vmem:[%s291 + $0x60] sm:$0xff]
        %v306 = vld [vmem:[%s291 + $0x68] sm:$0xff]
        %v307 = vld [vmem:[%s291 + $0x70] sm:$0xff]
        %v308 = vld [vmem:[%s291 + $0x78] sm:$0xff]
        %v309 = vld [vmem:[%s1] sm:$0x7]
        %v310 = vld [vmem:[%s2] sm:$0x1]
        %v312 = vlaneseq
        %v313 = vshrl.u32 %v312, 7
        %v314 = vsub.s32 0, %v313
        %v315 = vrot.slane %v310, %v314
        %vm317 = vcmask 23552
        %v319 = vsel %vm317, %v293, 0
        %v322 = vsel %vm317, %v294, 0
        %v325 = vsel %vm317, %v295, 0
        %v328 = vsel %vm317, %v296, 0
        %v331 = vsel %vm317, %v297, 0
        %v334 = vsel %vm317, %v298, 0
        %v337 = vsel %vm317, %v299, 0
        %v340 = vsel %vm317, %v300, 0
        %v343 = vsel %vm317, %v301, 0
        %v346 = vsel %vm317, %v302, 0
        %v349 = vsel %vm317, %v303, 0
        %v352 = vsel %vm317, %v304, 0
        %v355 = vsel %vm317, %v305, 0
        %v358 = vsel %vm317, %v306, 0
        %v361 = vsel %vm317, %v307, 0
        %v364 = vsel %vm317, %v308, 0
        %vm366 = vcmask 1042432
        %v368 = vsel %vm366, %v309, 0
        %370 = vmatprep.subr.mxu0 0.0
        %371 = vmatpush1.msra.mxu0 0.0
        %372 = vmatprep.subr.mxu0 0.0
        %373 = vmatpush1.msra.mxu0 0.0
        %374 = vmatprep.subr.mxu0 0.0
        %375 = vmatpush1.msra.mxu0 0.0
        %376 = vmatprep.subr.mxu0 0.0
        %377 = vmatpush1.msra.mxu0 0.0
        %378 = vmatprep.subr.mxu0 0.0
        %379 = vmatpush1.msra.mxu0 0.0
        %380 = vmatprep.subr.mxu0 0.0
        %381 = vmatpush1.msra.mxu0 0.0
        %382 = vmatprep.subr.mxu0 0.0
        %383 = vmatpush1.msra.mxu0 0.0
        %384 = vmatprep.subr.mxu0 0.0
        %385 = vmatpush1.msra.mxu0 0.0
        %386 = vmatprep.subr.mxu0 0.0
        %387 = vmatpush1.msra.mxu0 0.0
        %388 = vmatprep.subr.mxu0 0.0
        %389 = vmatpush1.msra.mxu0 0.0
        %390 = vmatprep.subr.mxu0 0.0
        %391 = vmatpush1.msra.mxu0 0.0
        %392 = vmatprep.subr.mxu0 0.0
        %393 = vmatpush1.msra.mxu0 0.0
        %394 = vmatprep.subr.mxu0 0.0
        %395 = vmatpush1.msra.mxu0 0.0
        %396 = vmatprep.subr.mxu0 0.0
        %397 = vmatpush1.msra.mxu0 0.0
        %398 = vmatprep.subr.mxu0 0.0
        %399 = vmatpush1.msra.mxu0 0.0
        %400 = vmatprep.subr.mxu0 0.0
        %401 = vmatpush1.msra.mxu0 %v368
        %402 = vmatprep.subr.mxu0 0.0
        %403 = vmatpush2.msra.mxu0 0.0
        %404 = vmatprep.subr.mxu0 0.0
        %405 = vmatpush2.msra.mxu0 0.0
        %406 = vmatprep.subr.mxu0 0.0
        %407 = vmatpush2.msra.mxu0 0.0
        %408 = vmatprep.subr.mxu0 0.0
        %409 = vmatpush2.msra.mxu0 0.0
        %410 = vmatprep.subr.mxu0 0.0
        %411 = vmatpush2.msra.mxu0 0.0
        %412 = vmatprep.subr.mxu0 0.0
        %413 = vmatpush2.msra.mxu0 0.0
        %414 = vmatprep.subr.mxu0 0.0
        %415 = vmatpush2.msra.mxu0 0.0
        %416 = vmatprep.subr.mxu0 0.0
        %417 = vmatpush2.msra.mxu0 0.0
        %418 = vmatprep.subr.mxu0 0.0
        %419 = vmatpush2.msra.mxu0 0.0
        %420 = vmatprep.subr.mxu0 0.0
        %421 = vmatpush2.msra.mxu0 0.0
        %422 = vmatprep.subr.mxu0 0.0
        %423 = vmatpush2.msra.mxu0 0.0
        %424 = vmatprep.subr.mxu0 0.0
        %425 = vmatpush2.msra.mxu0 0.0
        %426 = vmatprep.subr.mxu0 0.0
        %427 = vmatpush2.msra.mxu0 0.0
        %428 = vmatprep.subr.mxu0 0.0
        %429 = vmatpush2.msra.mxu0 0.0
        %430 = vmatprep.subr.mxu0 0.0
        %431 = vmatpush2.msra.mxu0 0.0
        %432 = vmatprep.subr.mxu0 0.0
        %433 = vmatpush2.msra.mxu0 0.0
        %434 = vmatprep.mubr.f32.mxu0 0.0
        %435 = vmatmul.mubr.f32.gmra.mxu0 %v319
        %v436 = vpop.f32.mrf.mxu0
        %v437 = vadd.f32 %v315, %v436
        %v438 = vpop.f32.mrf.mxu0
        %439 = vmatprep.mubr.f32.mxu0 0.0
        %440 = vmatmul.mubr.f32.gmra.mxu0 %v322
        %v441 = vpop.f32.mrf.mxu0
        %v442 = vadd.f32 %v315, %v441
        %v443 = vpop.f32.mrf.mxu0
        %444 = vmatprep.mubr.f32.mxu0 0.0
        %445 = vmatmul.mubr.f32.gmra.mxu0 %v325
        %v446 = vpop.f32.mrf.mxu0
        %v447 = vadd.f32 %v315, %v446
        %v448 = vpop.f32.mrf.mxu0
        %449 = vmatprep.mubr.f32.mxu0 0.0
        %450 = vmatmul.mubr.f32.gmra.mxu0 %v328
        %v451 = vpop.f32.mrf.mxu0
        %v452 = vadd.f32 %v315, %v451
        %v453 = vpop.f32.mrf.mxu0
        %454 = vmatprep.mubr.f32.mxu0 0.0
        %455 = vmatmul.mubr.f32.gmra.mxu0 %v331
        %v456 = vpop.f32.mrf.mxu0
        %v457 = vadd.f32 %v315, %v456
        %v458 = vpop.f32.mrf.mxu0
        %459 = vmatprep.mubr.f32.mxu0 0.0
        %460 = vmatmul.mubr.f32.gmra.mxu0 %v334
        %v461 = vpop.f32.mrf.mxu0
        %v462 = vadd.f32 %v315, %v461
        %v463 = vpop.f32.mrf.mxu0
        %464 = vmatprep.mubr.f32.mxu0 0.0
        %465 = vmatmul.mubr.f32.gmra.mxu0 %v337
        %v466 = vpop.f32.mrf.mxu0
        %v467 = vadd.f32 %v315, %v466
        %v468 = vpop.f32.mrf.mxu0
        %469 = vmatprep.mubr.f32.mxu0 0.0
        %470 = vmatmul.mubr.f32.gmra.mxu0 %v340
        %v471 = vpop.f32.mrf.mxu0
        %v472 = vadd.f32 %v315, %v471
        %v473 = vpop.f32.mrf.mxu0
        %474 = vmatprep.mubr.f32.mxu0 0.0
        %475 = vmatmul.mubr.f32.gmra.mxu0 %v343
        %v476 = vpop.f32.mrf.mxu0
        %v477 = vadd.f32 %v315, %v476
        %v478 = vpop.f32.mrf.mxu0
        %479 = vmatprep.mubr.f32.mxu0 0.0
        %480 = vmatmul.mubr.f32.gmra.mxu0 %v346
        %v481 = vpop.f32.mrf.mxu0
        %v482 = vadd.f32 %v315, %v481
        %v483 = vpop.f32.mrf.mxu0
        %484 = vmatprep.mubr.f32.mxu0 0.0
        %485 = vmatmul.mubr.f32.gmra.mxu0 %v349
        %v486 = vpop.f32.mrf.mxu0
        %v487 = vadd.f32 %v315, %v486
        %v488 = vpop.f32.mrf.mxu0
        %489 = vmatprep.mubr.f32.mxu0 0.0
        %490 = vmatmul.mubr.f32.gmra.mxu0 %v352
        %v491 = vpop.f32.mrf.mxu0
        %v492 = vadd.f32 %v315, %v491
        %v493 = vpop.f32.mrf.mxu0
        %494 = vmatprep.mubr.f32.mxu0 0.0
        %495 = vmatmul.mubr.f32.gmra.mxu0 %v355
        %v496 = vpop.f32.mrf.mxu0
        %v497 = vadd.f32 %v315, %v496
        %v498 = vpop.f32.mrf.mxu0
        %499 = vmatprep.mubr.f32.mxu0 0.0
        %500 = vmatmul.mubr.f32.gmra.mxu0 %v358
        %v501 = vpop.f32.mrf.mxu0
        %v502 = vadd.f32 %v315, %v501
        %v503 = vpop.f32.mrf.mxu0
        %504 = vmatprep.mubr.f32.mxu0 0.0
        %505 = vmatmul.mubr.f32.gmra.mxu0 %v361
        %v506 = vpop.f32.mrf.mxu0
        %v507 = vadd.f32 %v315, %v506
        %v508 = vpop.f32.mrf.mxu0
        %509 = vmatprep.mubr.f32.mxu0 0.0
        %510 = vmatmul.mubr.f32.gmra.mxu0 %v364
        %v511 = vpop.f32.mrf.mxu0
        %v512 = vadd.f32 %v315, %v511
        %v513 = vpop.f32.mrf.mxu0
        %514 = vdwg.mxu0
        %v515 = vmax.f32 %v437, 0.0
        %v516 = vmax.f32 %v442, 0.0
        %v517 = vmax.f32 %v447, 0.0
        %v518 = vmax.f32 %v452, 0.0
        %v519 = vmax.f32 %v457, 0.0
        %v520 = vmax.f32 %v462, 0.0
        %v521 = vmax.f32 %v467, 0.0
        %v522 = vmax.f32 %v472, 0.0
        %v523 = vmax.f32 %v477, 0.0
        %v524 = vmax.f32 %v482, 0.0
        %v525 = vmax.f32 %v487, 0.0
        %v526 = vmax.f32 %v492, 0.0
        %v527 = vmax.f32 %v497, 0.0
        %v528 = vmax.f32 %v502, 0.0
        %v529 = vmax.f32 %v507, 0.0
        %v530 = vmax.f32 %v512, 0.0
        %v531 = vpack.c.bf16 %v516, %v515
        %v532 = vpack.c.bf16 %v518, %v517
        %v533 = vpack.c.bf16 %v520, %v519
        %v534 = vpack.c.bf16 %v522, %v521
        %v535 = vpack.c.bf16 %v524, %v523
        %v536 = vpack.c.bf16 %v526, %v525
        %v537 = vpack.c.bf16 %v528, %v527
        %v538 = vpack.c.bf16 %v530, %v529
        %v539 = vld [vmem:[%s3] sm:$0xf]
        %v540 = vld [vmem:[%s3 + $0x4] sm:$0xf]
        %v541 = vld [vmem:[%s3 + $0x8] sm:$0xf]
        %v542 = vld [vmem:[%s3 + $0xc] sm:$0xf]
        %v543 = vld [vmem:[%s3 + $0x10] sm:$0xf]
        %v544 = vld [vmem:[%s3 + $0x14] sm:$0xf]
        %v545 = vld [vmem:[%s3 + $0x18] sm:$0xf]
        %v546 = vld [vmem:[%s3 + $0x1c] sm:$0xf]
        %v547 = vld [vmem:[%s4] sm:$0x1]
        %v549 = vlaneseq
        %v550 = vshrl.u32 %v549, 7
        %v551 = vsub.s32 0, %v550
        %v552 = vrot.slane %v547, %v551
        %v562 = vunpack.c.l.b16 %v539
        %v563 = vunpack.c.l.b16 %v540
        %v564 = vunpack.c.l.b16 %v541
        %v565 = vunpack.c.l.b16 %v542
        %v566 = vunpack.c.l.b16 %v543
        %v567 = vunpack.c.l.b16 %v544
        %v568 = vunpack.c.l.b16 %v545
        %v569 = vunpack.c.l.b16 %v546
        %v570 = vpack.c.b16 %v563, %v562
        %v571 = vpack.c.b16 %v565, %v564
        %v572 = vpack.c.b16 %v567, %v566
        %v573 = vpack.c.b16 %v569, %v568
        %vm578 = vcmask 523264
        %v580 = vsel %vm578, %v531, 0
        %v583 = vsel %vm578, %v532, 0
        %v586 = vsel %vm578, %v533, 0
        %v589 = vsel %vm578, %v534, 0
        %v592 = vsel %vm578, %v535, 0
        %v595 = vsel %vm578, %v536, 0
        %v598 = vsel %vm578, %v537, 0
        %v601 = vsel %vm578, %v538, 0
        %603 = vmatprep.subr.bf16.mxu0 0
        %604 = vmatpush1.bf16.msra.mxu0 0
        %605 = vmatprep.subr.bf16.mxu0 0
        %606 = vmatpush1.bf16.msra.mxu0 0
        %607 = vmatprep.subr.bf16.mxu0 0
        %608 = vmatpush1.bf16.msra.mxu0 0
        %609 = vmatprep.subr.bf16.mxu0 0
        %610 = vmatpush1.bf16.msra.mxu0 0
        %611 = vmatprep.subr.bf16.mxu0 0
        %612 = vmatpush1.bf16.msra.mxu0 %v573
        %613 = vmatprep.subr.bf16.mxu0 0
        %614 = vmatpush1.bf16.msra.mxu0 %v572
        %615 = vmatprep.subr.bf16.mxu0 0
        %616 = vmatpush1.bf16.msra.mxu0 %v571
        %617 = vmatprep.subr.bf16.mxu0 0
        %618 = vmatpush1.bf16.msra.mxu0 %v570
        %619 = vmatprep.subr.bf16.mxu0 0
        %620 = vmatpush2.bf16.msra.mxu0 0
        %621 = vmatprep.subr.bf16.mxu0 0
        %622 = vmatpush2.bf16.msra.mxu0 0
        %623 = vmatprep.subr.bf16.mxu0 0
        %624 = vmatpush2.bf16.msra.mxu0 0
        %625 = vmatprep.subr.bf16.mxu0 0
        %626 = vmatpush2.bf16.msra.mxu0 0
        %627 = vmatprep.subr.bf16.mxu0 0
        %628 = vmatpush2.bf16.msra.mxu0 0
        %629 = vmatprep.subr.bf16.mxu0 0
        %630 = vmatpush2.bf16.msra.mxu0 0
        %631 = vmatprep.subr.bf16.mxu0 0
        %632 = vmatpush2.bf16.msra.mxu0 0
        %633 = vmatprep.subr.bf16.mxu0 0
        %634 = vmatpush2.bf16.msra.mxu0 0
        %635 = vmatprep.mubr.bf16.mxu0 0
        %636 = vmatmul.mubr.bf16.gmra.mxu0 %v580
        %v637 = vpop.f32.mrf.mxu0
        %v638 = vadd.f32 %v552, %v637
        %v639 = vpop.f32.mrf.mxu0
        %v640 = vpop.f32.mrf.mxu0
        %v641 = vadd.f32 %v552, %v640
        %v642 = vpop.f32.mrf.mxu0
        %643 = vmatprep.mubr.bf16.mxu0 0
        %644 = vmatmul.mubr.bf16.gmra.mxu0 %v583
        %v645 = vpop.f32.mrf.mxu0
        %v646 = vadd.f32 %v552, %v645
        %v647 = vpop.f32.mrf.mxu0
        %v648 = vpop.f32.mrf.mxu0
        %v649 = vadd.f32 %v552, %v648
        %v650 = vpop.f32.mrf.mxu0
        %651 = vmatprep.mubr.bf16.mxu0 0
        %652 = vmatmul.mubr.bf16.gmra.mxu0 %v586
        %v653 = vpop.f32.mrf.mxu0
        %v654 = vadd.f32 %v552, %v653
        %v655 = vpop.f32.mrf.mxu0
        %v656 = vpop.f32.mrf.mxu0
        %v657 = vadd.f32 %v552, %v656
        %v658 = vpop.f32.mrf.mxu0
        %659 = vmatprep.mubr.bf16.mxu0 0
        %660 = vmatmul.mubr.bf16.gmra.mxu0 %v589
        %v661 = vpop.f32.mrf.mxu0
        %v662 = vadd.f32 %v552, %v661
        %v663 = vpop.f32.mrf.mxu0
        %v664 = vpop.f32.mrf.mxu0
        %v665 = vadd.f32 %v552, %v664
        %v666 = vpop.f32.mrf.mxu0
        %667 = vmatprep.mubr.bf16.mxu0 0
        %668 = vmatmul.mubr.bf16.gmra.mxu0 %v592
        %v669 = vpop.f32.mrf.mxu0
        %v670 = vadd.f32 %v552, %v669
        %v671 = vpop.f32.mrf.mxu0
        %v672 = vpop.f32.mrf.mxu0
        %v673 = vadd.f32 %v552, %v672
        %v674 = vpop.f32.mrf.mxu0
        %675 = vmatprep.mubr.bf16.mxu0 0
        %676 = vmatmul.mubr.bf16.gmra.mxu0 %v595
        %v677 = vpop.f32.mrf.mxu0
        %v678 = vadd.f32 %v552, %v677
        %v679 = vpop.f32.mrf.mxu0
        %v680 = vpop.f32.mrf.mxu0
        %v681 = vadd.f32 %v552, %v680
        %v682 = vpop.f32.mrf.mxu0
        %683 = vmatprep.mubr.bf16.mxu0 0
        %684 = vmatmul.mubr.bf16.gmra.mxu0 %v598
        %v685 = vpop.f32.mrf.mxu0
        %v686 = vadd.f32 %v552, %v685
        %v687 = vpop.f32.mrf.mxu0
        %v688 = vpop.f32.mrf.mxu0
        %v689 = vadd.f32 %v552, %v688
        %v690 = vpop.f32.mrf.mxu0
        %691 = vmatprep.mubr.bf16.mxu0 0
        %692 = vmatmul.mubr.bf16.gmra.mxu0 %v601
        %v693 = vpop.f32.mrf.mxu0
        %v694 = vadd.f32 %v552, %v693
        %v695 = vpop.f32.mrf.mxu0
        %v696 = vpop.f32.mrf.mxu0
        %v697 = vadd.f32 %v552, %v696
        %v698 = vpop.f32.mrf.mxu0
        %699 = vdwg.mxu0
        %v700 = vmax.f32 %v638, 0.0
        %v701 = vmax.f32 %v641, 0.0
        %v702 = vmax.f32 %v646, 0.0
        %v703 = vmax.f32 %v649, 0.0
        %v704 = vmax.f32 %v654, 0.0
        %v705 = vmax.f32 %v657, 0.0
        %v706 = vmax.f32 %v662, 0.0
        %v707 = vmax.f32 %v665, 0.0
        %v708 = vmax.f32 %v670, 0.0
        %v709 = vmax.f32 %v673, 0.0
        %v710 = vmax.f32 %v678, 0.0
        %v711 = vmax.f32 %v681, 0.0
        %v712 = vmax.f32 %v686, 0.0
        %v713 = vmax.f32 %v689, 0.0
        %v714 = vmax.f32 %v694, 0.0
        %v715 = vmax.f32 %v697, 0.0
        %v716 = vpack.c.bf16 %v701, %v700
        %v717 = vpack.c.bf16 %v703, %v702
        %v718 = vpack.c.bf16 %v705, %v704
        %v719 = vpack.c.bf16 %v707, %v706
        %v720 = vpack.c.bf16 %v709, %v708
        %v721 = vpack.c.bf16 %v711, %v710
        %v722 = vpack.c.bf16 %v713, %v712
        %v723 = vpack.c.bf16 %v715, %v714
        %v724 = vld [vmem:[#allocation2] sm:$0xff]
        %v725 = vld [vmem:[#allocation2 + $0x20] sm:$0xff]
        %v726 = vld [vmem:[#allocation2 + $0x40] sm:$0xff]
        %v727 = vld [vmem:[#allocation2 + $0x60] sm:$0xff]
        %v728 = vld [vmem:[#allocation2 + $0x80] sm:$0xff]
        %v729 = vld [vmem:[#allocation2 + $0xa0] sm:$0xff]
        %v730 = vld [vmem:[#allocation2 + $0xc0] sm:$0xff]
        %v731 = vld [vmem:[#allocation2 + $0xe0] sm:$0xff]
        %v732 = vld [vmem:[#allocation2 + $0x100] sm:$0xff]
        %v733 = vld [vmem:[#allocation2 + $0x120] sm:$0xff]
        %v734 = vld [vmem:[#allocation2 + $0x140] sm:$0xff]
        %v735 = vld [vmem:[#allocation2 + $0x160] sm:$0xff]
        %v736 = vld [vmem:[#allocation2 + $0x180] sm:$0xff]
        %v737 = vld [vmem:[#allocation2 + $0x1a0] sm:$0xff]
        %v738 = vld [vmem:[#allocation2 + $0x1c0] sm:$0xff]
        %v739 = vld [vmem:[#allocation2 + $0x1e0] sm:$0xff]
        %v740 = vld [vmem:[%s6] sm:$0x3]
        %v742 = vlaneseq
        %v743 = vshrl.u32 %v742, 7
        %v744 = vsub.s32 0, %v743
        %v745 = vrot.slane %v740, %v744
        %v746 = vlaneseq
        %v747 = vshrl.u32 %v746, 7
        %v748 = vsub.s32 1, %v747
        %v749 = vrot.slane %v740, %v748
        %v768 = vunpack.c.l.b16 %v724
        %v769 = vunpack.c.h.b16 %v724
        %v770 = vunpack.c.l.b16 %v725
        %v771 = vunpack.c.h.b16 %v725
        %v772 = vunpack.c.l.b16 %v726
        %v773 = vunpack.c.h.b16 %v726
        %v774 = vunpack.c.l.b16 %v727
        %v775 = vunpack.c.h.b16 %v727
        %v776 = vunpack.c.l.b16 %v728
        %v777 = vunpack.c.h.b16 %v728
        %v778 = vunpack.c.l.b16 %v729
        %v779 = vunpack.c.h.b16 %v729
        %v780 = vunpack.c.l.b16 %v730
        %v781 = vunpack.c.h.b16 %v730
        %v782 = vunpack.c.l.b16 %v731
        %v783 = vunpack.c.h.b16 %v731
        %v784 = vunpack.c.l.b16 %v732
        %v785 = vunpack.c.h.b16 %v732
        %v786 = vunpack.c.l.b16 %v733
        %v787 = vunpack.c.h.b16 %v733
        %v788 = vunpack.c.l.b16 %v734
        %v789 = vunpack.c.h.b16 %v734
        %v790 = vunpack.c.l.b16 %v735
        %v791 = vunpack.c.h.b16 %v735
        %v792 = vunpack.c.l.b16 %v736
        %v793 = vunpack.c.h.b16 %v736
        %v794 = vunpack.c.l.b16 %v737
        %v795 = vunpack.c.h.b16 %v737
        %v796 = vunpack.c.l.b16 %v738
        %v797 = vunpack.c.h.b16 %v738
        %v798 = vunpack.c.l.b16 %v739
        %v799 = vunpack.c.h.b16 %v739
        %v800 = vpack.c.b16 %v770, %v768
        %v801 = vpack.c.b16 %v771, %v769
        %v802 = vpack.c.b16 %v774, %v772
        %v803 = vpack.c.b16 %v775, %v773
        %v804 = vpack.c.b16 %v778, %v776
        %v805 = vpack.c.b16 %v779, %v777
        %v806 = vpack.c.b16 %v782, %v780
        %v807 = vpack.c.b16 %v783, %v781
        %v808 = vpack.c.b16 %v786, %v784
        %v809 = vpack.c.b16 %v787, %v785
        %v810 = vpack.c.b16 %v790, %v788
        %v811 = vpack.c.b16 %v791, %v789
        %v812 = vpack.c.b16 %v794, %v792
        %v813 = vpack.c.b16 %v795, %v793
        %v814 = vpack.c.b16 %v798, %v796
        %v815 = vpack.c.b16 %v799, %v797
        %832 = vmatprep.subr.bf16.mxu0 %v815
        %833 = vmatpush1.bf16.msra.mxu0 %v814
        %834 = vmatprep.subr.bf16.mxu0 %v813
        %835 = vmatpush1.bf16.msra.mxu0 %v812
        %836 = vmatprep.subr.bf16.mxu0 %v811
        %837 = vmatpush1.bf16.msra.mxu0 %v810
        %838 = vmatprep.subr.bf16.mxu0 %v809
        %839 = vmatpush1.bf16.msra.mxu0 %v808
        %840 = vmatprep.subr.bf16.mxu0 %v807
        %841 = vmatpush1.bf16.msra.mxu0 %v806
        %842 = vmatprep.subr.bf16.mxu0 %v805
        %843 = vmatpush1.bf16.msra.mxu0 %v804
        %844 = vmatprep.subr.bf16.mxu0 %v803
        %845 = vmatpush1.bf16.msra.mxu0 %v802
        %846 = vmatprep.subr.bf16.mxu0 %v801
        %847 = vmatpush1.bf16.msra.mxu0 %v800
        %848 = vmatprep.subr.bf16.mxu0 0
        %849 = vmatpush2.bf16.msra.mxu0 0
        %850 = vmatprep.subr.bf16.mxu0 0
        %851 = vmatpush2.bf16.msra.mxu0 0
        %852 = vmatprep.subr.bf16.mxu0 0
        %853 = vmatpush2.bf16.msra.mxu0 0
        %854 = vmatprep.subr.bf16.mxu0 0
        %855 = vmatpush2.bf16.msra.mxu0 0
        %856 = vmatprep.subr.bf16.mxu0 0
        %857 = vmatpush2.bf16.msra.mxu0 0
        %858 = vmatprep.subr.bf16.mxu0 0
        %859 = vmatpush2.bf16.msra.mxu0 0
        %860 = vmatprep.subr.bf16.mxu0 0
        %861 = vmatpush2.bf16.msra.mxu0 0
        %862 = vmatprep.subr.bf16.mxu0 0
        %863 = vmatpush2.bf16.msra.mxu0 0
        %864 = vmatprep.mubr.bf16.mxu0 0
        %865 = vmatmul.mubr.bf16.gmra.mxu0 %v716
        %v866 = vpop.f32.mrf.mxu0
        %v867 = vadd.f32 %v745, %v866
        %v868 = vpop.f32.mrf.mxu0
        %v869 = vadd.f32 %v749, %v868
        %v870 = vpop.f32.mrf.mxu0
        %v871 = vadd.f32 %v745, %v870
        %v872 = vpop.f32.mrf.mxu0
        %v873 = vadd.f32 %v749, %v872
        %874 = vmatprep.mubr.bf16.mxu0 0
        %875 = vmatmul.mubr.bf16.gmra.mxu0 %v717
        %v876 = vpop.f32.mrf.mxu0
        %v877 = vadd.f32 %v745, %v876
        %v878 = vpop.f32.mrf.mxu0
        %v879 = vadd.f32 %v749, %v878
        %v880 = vpop.f32.mrf.mxu0
        %v881 = vadd.f32 %v745, %v880
        %v882 = vpop.f32.mrf.mxu0
        %v883 = vadd.f32 %v749, %v882
        %884 = vmatprep.mubr.bf16.mxu0 0
        %885 = vmatmul.mubr.bf16.gmra.mxu0 %v718
        %v886 = vpop.f32.mrf.mxu0
        %v887 = vadd.f32 %v745, %v886
        %v888 = vpop.f32.mrf.mxu0
        %v889 = vadd.f32 %v749, %v888
        %v890 = vpop.f32.mrf.mxu0
        %v891 = vadd.f32 %v745, %v890
        %v892 = vpop.f32.mrf.mxu0
        %v893 = vadd.f32 %v749, %v892
        %894 = vmatprep.mubr.bf16.mxu0 0
        %895 = vmatmul.mubr.bf16.gmra.mxu0 %v719
        %v896 = vpop.f32.mrf.mxu0
        %v897 = vadd.f32 %v745, %v896
        %v898 = vpop.f32.mrf.mxu0
        %v899 = vadd.f32 %v749, %v898
        %v900 = vpop.f32.mrf.mxu0
        %v901 = vadd.f32 %v745, %v900
        %v902 = vpop.f32.mrf.mxu0
        %v903 = vadd.f32 %v749, %v902
        %904 = vmatprep.mubr.bf16.mxu0 0
        %905 = vmatmul.mubr.bf16.gmra.mxu0 %v720
        %v906 = vpop.f32.mrf.mxu0
        %v907 = vadd.f32 %v745, %v906
        %v908 = vpop.f32.mrf.mxu0
        %v909 = vadd.f32 %v749, %v908
        %v910 = vpop.f32.mrf.mxu0
        %v911 = vadd.f32 %v745, %v910
        %v912 = vpop.f32.mrf.mxu0
        %v913 = vadd.f32 %v749, %v912
        %914 = vmatprep.mubr.bf16.mxu0 0
        %915 = vmatmul.mubr.bf16.gmra.mxu0 %v721
        %v916 = vpop.f32.mrf.mxu0
        %v917 = vadd.f32 %v745, %v916
        %v918 = vpop.f32.mrf.mxu0
        %v919 = vadd.f32 %v749, %v918
        %v920 = vpop.f32.mrf.mxu0
        %v921 = vadd.f32 %v745, %v920
        %v922 = vpop.f32.mrf.mxu0
        %v923 = vadd.f32 %v749, %v922
        %924 = vmatprep.mubr.bf16.mxu0 0
        %925 = vmatmul.mubr.bf16.gmra.mxu0 %v722
        %v926 = vpop.f32.mrf.mxu0
        %v927 = vadd.f32 %v745, %v926
        %v928 = vpop.f32.mrf.mxu0
        %v929 = vadd.f32 %v749, %v928
        %v930 = vpop.f32.mrf.mxu0
        %v931 = vadd.f32 %v745, %v930
        %v932 = vpop.f32.mrf.mxu0
        %v933 = vadd.f32 %v749, %v932
        %934 = vmatprep.mubr.bf16.mxu0 0
        %935 = vmatmul.mubr.bf16.gmra.mxu0 %v723
        %v936 = vpop.f32.mrf.mxu0
        %v937 = vadd.f32 %v745, %v936
        %v938 = vpop.f32.mrf.mxu0
        %v939 = vadd.f32 %v749, %v938
        %v940 = vpop.f32.mrf.mxu0
        %v941 = vadd.f32 %v745, %v940
        %v942 = vpop.f32.mrf.mxu0
        %v943 = vadd.f32 %v749, %v942
        %944 = vdwg.mxu0
        %v945 = vmax.f32 %v867, 0.0
        %v946 = vmax.f32 %v869, 0.0
        %v947 = vmax.f32 %v871, 0.0
        %v948 = vmax.f32 %v873, 0.0
        %v949 = vmax.f32 %v877, 0.0
        %v950 = vmax.f32 %v879, 0.0
        %v951 = vmax.f32 %v881, 0.0
        %v952 = vmax.f32 %v883, 0.0
        %v953 = vmax.f32 %v887, 0.0
        %v954 = vmax.f32 %v889, 0.0
        %v955 = vmax.f32 %v891, 0.0
        %v956 = vmax.f32 %v893, 0.0
        %v957 = vmax.f32 %v897, 0.0
        %v958 = vmax.f32 %v899, 0.0
        %v959 = vmax.f32 %v901, 0.0
        %v960 = vmax.f32 %v903, 0.0
        %v961 = vmax.f32 %v907, 0.0
        %v962 = vmax.f32 %v909, 0.0
        %v963 = vmax.f32 %v911, 0.0
        %v964 = vmax.f32 %v913, 0.0
        %v965 = vmax.f32 %v917, 0.0
        %v966 = vmax.f32 %v919, 0.0
        %v967 = vmax.f32 %v921, 0.0
        %v968 = vmax.f32 %v923, 0.0
        %v969 = vmax.f32 %v927, 0.0
        %v970 = vmax.f32 %v929, 0.0
        %v971 = vmax.f32 %v931, 0.0
        %v972 = vmax.f32 %v933, 0.0
        %v973 = vmax.f32 %v937, 0.0
        %v974 = vmax.f32 %v939, 0.0
        %v975 = vmax.f32 %v941, 0.0
        %v976 = vmax.f32 %v943, 0.0
        %v977 = vmax.f32 %v945, %v949
        %v978 = vmax.f32 %v947, %v951
        %v979 = vmax.f32 %v977, %v953
        %v980 = vmax.f32 %v978, %v955
        %v981 = vmax.f32 %v979, %v957
        %v982 = vmax.f32 %v980, %v959
        %v983 = vmax.f32 %v981, %v961
        %v984 = vmax.f32 %v982, %v963
        %v985 = vmax.f32 %v983, %v965
        %v986 = vmax.f32 %v984, %v967
        %v987 = vmax.f32 %v985, %v969
        %v988 = vmax.f32 %v986, %v971
        %v989 = vmax.f32 %v987, %v973
        %v990 = vmax.f32 %v988, %v975
        %v991 = vmax.f32 %v989, %v990
        %v992 = vrot.slane %v991, 4
        %v993 = vmax.f32 %v991, %v992
        %v994 = vrot.slane %v993, 2
        %v995 = vmax.f32 %v993, %v994
        %v996 = vrot.slane %v995, 1
        %v997 = vmax.f32 %v995, %v996
        %v998 = vmax.f32 %v946, %v950
        %v999 = vmax.f32 %v948, %v952
        %v1000 = vmax.f32 %v998, %v954
        %v1001 = vmax.f32 %v999, %v956
        %v1002 = vmax.f32 %v1000, %v958
        %v1003 = vmax.f32 %v1001, %v960
        %v1004 = vmax.f32 %v1002, %v962
        %v1005 = vmax.f32 %v1003, %v964
        %v1006 = vmax.f32 %v1004, %v966
        %v1007 = vmax.f32 %v1005, %v968
        %v1008 = vmax.f32 %v1006, %v970
        %v1009 = vmax.f32 %v1007, %v972
        %v1010 = vmax.f32 %v1008, %v974
        %v1011 = vmax.f32 %v1009, %v976
        %v1012 = vmax.f32 %v1010, %v1011
        %v1013 = vrot.slane %v1012, 4
        %v1014 = vmax.f32 %v1012, %v1013
        %v1015 = vrot.slane %v1014, 2
        %v1016 = vmax.f32 %v1014, %v1015
        %v1017 = vrot.slane %v1016, 1
        %v1018 = vmax.f32 %v1016, %v1017
        %v1019 = vld [vmem:[#allocation2 + $0x8] sm:$0xff]
        %v1020 = vld [vmem:[#allocation2 + $0x28] sm:$0xff]
        %v1021 = vld [vmem:[#allocation2 + $0x48] sm:$0xff]
        %v1022 = vld [vmem:[#allocation2 + $0x68] sm:$0xff]
        %v1023 = vld [vmem:[#allocation2 + $0x88] sm:$0xff]
        %v1024 = vld [vmem:[#allocation2 + $0xa8] sm:$0xff]
        %v1025 = vld [vmem:[#allocation2 + $0xc8] sm:$0xff]
        %v1026 = vld [vmem:[#allocation2 + $0xe8] sm:$0xff]
        %v1027 = vld [vmem:[#allocation2 + $0x108] sm:$0xff]
        %v1028 = vld [vmem:[#allocation2 + $0x128] sm:$0xff]
        %v1029 = vld [vmem:[#allocation2 + $0x148] sm:$0xff]
        %v1030 = vld [vmem:[#allocation2 + $0x168] sm:$0xff]
        %v1031 = vld [vmem:[#allocation2 + $0x188] sm:$0xff]
        %v1032 = vld [vmem:[#allocation2 + $0x1a8] sm:$0xff]
        %v1033 = vld [vmem:[#allocation2 + $0x1c8] sm:$0xff]
        %v1034 = vld [vmem:[#allocation2 + $0x1e8] sm:$0xff]
        %v1035 = vld [vmem:[%s6 + $0x2] sm:$0x3]
        %v1037 = vlaneseq
        %v1038 = vshrl.u32 %v1037, 7
        %v1039 = vsub.s32 0, %v1038
        %v1040 = vrot.slane %v1035, %v1039
        %v1041 = vlaneseq
        %v1042 = vshrl.u32 %v1041, 7
        %v1043 = vsub.s32 1, %v1042
        %v1044 = vrot.slane %v1035, %v1043
        %v1063 = vunpack.c.l.b16 %v1019
        %v1064 = vunpack.c.h.b16 %v1019
        %v1065 = vunpack.c.l.b16 %v1020
        %v1066 = vunpack.c.h.b16 %v1020
        %v1067 = vunpack.c.l.b16 %v1021
        %v1068 = vunpack.c.h.b16 %v1021
        %v1069 = vunpack.c.l.b16 %v1022
        %v1070 = vunpack.c.h.b16 %v1022
        %v1071 = vunpack.c.l.b16 %v1023
        %v1072 = vunpack.c.h.b16 %v1023
        %v1073 = vunpack.c.l.b16 %v1024
        %v1074 = vunpack.c.h.b16 %v1024
        %v1075 = vunpack.c.l.b16 %v1025
        %v1076 = vunpack.c.h.b16 %v1025
        %v1077 = vunpack.c.l.b16 %v1026
        %v1078 = vunpack.c.h.b16 %v1026
        %v1079 = vunpack.c.l.b16 %v1027
        %v1080 = vunpack.c.h.b16 %v1027
        %v1081 = vunpack.c.l.b16 %v1028
        %v1082 = vunpack.c.h.b16 %v1028
        %v1083 = vunpack.c.l.b16 %v1029
        %v1084 = vunpack.c.h.b16 %v1029
        %v1085 = vunpack.c.l.b16 %v1030
        %v1086 = vunpack.c.h.b16 %v1030
        %v1087 = vunpack.c.l.b16 %v1031
        %v1088 = vunpack.c.h.b16 %v1031
        %v1089 = vunpack.c.l.b16 %v1032
        %v1090 = vunpack.c.h.b16 %v1032
        %v1091 = vunpack.c.l.b16 %v1033
        %v1092 = vunpack.c.h.b16 %v1033
        %v1093 = vunpack.c.l.b16 %v1034
        %v1094 = vunpack.c.h.b16 %v1034
        %v1095 = vpack.c.b16 %v1065, %v1063
        %v1096 = vpack.c.b16 %v1066, %v1064
        %v1097 = vpack.c.b16 %v1069, %v1067
        %v1098 = vpack.c.b16 %v1070, %v1068
        %v1099 = vpack.c.b16 %v1073, %v1071
        %v1100 = vpack.c.b16 %v1074, %v1072
        %v1101 = vpack.c.b16 %v1077, %v1075
        %v1102 = vpack.c.b16 %v1078, %v1076
        %v1103 = vpack.c.b16 %v1081, %v1079
        %v1104 = vpack.c.b16 %v1082, %v1080
        %v1105 = vpack.c.b16 %v1085, %v1083
        %v1106 = vpack.c.b16 %v1086, %v1084
        %v1107 = vpack.c.b16 %v1089, %v1087
        %v1108 = vpack.c.b16 %v1090, %v1088
        %v1109 = vpack.c.b16 %v1093, %v1091
        %v1110 = vpack.c.b16 %v1094, %v1092
        %1127 = vmatprep.subr.bf16.mxu0 %v1110
        %1128 = vmatpush1.bf16.msra.mxu0 %v1109
        %1129 = vmatprep.subr.bf16.mxu0 %v1108
        %1130 = vmatpush1.bf16.msra.mxu0 %v1107
        %1131 = vmatprep.subr.bf16.mxu0 %v1106
        %1132 = vmatpush1.bf16.msra.mxu0 %v1105
        %1133 = vmatprep.subr.bf16.mxu0 %v1104
        %1134 = vmatpush1.bf16.msra.mxu0 %v1103
        %1135 = vmatprep.subr.bf16.mxu0 %v1102
        %1136 = vmatpush1.bf16.msra.mxu0 %v1101
        %1137 = vmatprep.subr.bf16.mxu0 %v1100
        %1138 = vmatpush1.bf16.msra.mxu0 %v1099
        %1139 = vmatprep.subr.bf16.mxu0 %v1098
        %1140 = vmatpush1.bf16.msra.mxu0 %v1097
        %1141 = vmatprep.subr.bf16.mxu0 %v1096
        %1142 = vmatpush1.bf16.msra.mxu0 %v1095
        %1143 = vmatprep.subr.bf16.mxu0 0
        %1144 = vmatpush2.bf16.msra.mxu0 0
        %1145 = vmatprep.subr.bf16.mxu0 0
        %1146 = vmatpush2.bf16.msra.mxu0 0
        %1147 = vmatprep.subr.bf16.mxu0 0
        %1148 = vmatpush2.bf16.msra.mxu0 0
        %1149 = vmatprep.subr.bf16.mxu0 0
        %1150 = vmatpush2.bf16.msra.mxu0 0
        %1151 = vmatprep.subr.bf16.mxu0 0
        %1152 = vmatpush2.bf16.msra.mxu0 0
        %1153 = vmatprep.subr.bf16.mxu0 0
        %1154 = vmatpush2.bf16.msra.mxu0 0
        %1155 = vmatprep.subr.bf16.mxu0 0
        %1156 = vmatpush2.bf16.msra.mxu0 0
        %1157 = vmatprep.subr.bf16.mxu0 0
        %1158 = vmatpush2.bf16.msra.mxu0 0
        %1159 = vmatprep.mubr.bf16.mxu0 0
        %1160 = vmatmul.mubr.bf16.gmra.mxu0 %v716
        %v1161 = vpop.f32.mrf.mxu0
        %v1162 = vadd.f32 %v1040, %v1161
        %v1163 = vpop.f32.mrf.mxu0
        %v1164 = vadd.f32 %v1044, %v1163
        %v1165 = vpop.f32.mrf.mxu0
        %v1166 = vadd.f32 %v1040, %v1165
        %v1167 = vpop.f32.mrf.mxu0
        %v1168 = vadd.f32 %v1044, %v1167
        %1169 = vmatprep.mubr.bf16.mxu0 0
        %1170 = vmatmul.mubr.bf16.gmra.mxu0 %v717
        %v1171 = vpop.f32.mrf.mxu0
        %v1172 = vadd.f32 %v1040, %v1171
        %v1173 = vpop.f32.mrf.mxu0
        %v1174 = vadd.f32 %v1044, %v1173
        %v1175 = vpop.f32.mrf.mxu0
        %v1176 = vadd.f32 %v1040, %v1175
        %v1177 = vpop.f32.mrf.mxu0
        %v1178 = vadd.f32 %v1044, %v1177
        %1179 = vmatprep.mubr.bf16.mxu0 0
        %1180 = vmatmul.mubr.bf16.gmra.mxu0 %v718
        %v1181 = vpop.f32.mrf.mxu0
        %v1182 = vadd.f32 %v1040, %v1181
        %v1183 = vpop.f32.mrf.mxu0
        %v1184 = vadd.f32 %v1044, %v1183
        %v1185 = vpop.f32.mrf.mxu0
        %v1186 = vadd.f32 %v1040, %v1185
        %v1187 = vpop.f32.mrf.mxu0
        %v1188 = vadd.f32 %v1044, %v1187
        %1189 = vmatprep.mubr.bf16.mxu0 0
        %1190 = vmatmul.mubr.bf16.gmra.mxu0 %v719
        %v1191 = vpop.f32.mrf.mxu0
        %v1192 = vadd.f32 %v1040, %v1191
        %v1193 = vpop.f32.mrf.mxu0
        %v1194 = vadd.f32 %v1044, %v1193
        %v1195 = vpop.f32.mrf.mxu0
        %v1196 = vadd.f32 %v1040, %v1195
        %v1197 = vpop.f32.mrf.mxu0
        %v1198 = vadd.f32 %v1044, %v1197
        %1199 = vmatprep.mubr.bf16.mxu0 0
        %1200 = vmatmul.mubr.bf16.gmra.mxu0 %v720
        %v1201 = vpop.f32.mrf.mxu0
        %v1202 = vadd.f32 %v1040, %v1201
        %v1203 = vpop.f32.mrf.mxu0
        %v1204 = vadd.f32 %v1044, %v1203
        %v1205 = vpop.f32.mrf.mxu0
        %v1206 = vadd.f32 %v1040, %v1205
        %v1207 = vpop.f32.mrf.mxu0
        %v1208 = vadd.f32 %v1044, %v1207
        %1209 = vmatprep.mubr.bf16.mxu0 0
        %1210 = vmatmul.mubr.bf16.gmra.mxu0 %v721
        %v1211 = vpop.f32.mrf.mxu0
        %v1212 = vadd.f32 %v1040, %v1211
        %v1213 = vpop.f32.mrf.mxu0
        %v1214 = vadd.f32 %v1044, %v1213
        %v1215 = vpop.f32.mrf.mxu0
        %v1216 = vadd.f32 %v1040, %v1215
        %v1217 = vpop.f32.mrf.mxu0
        %v1218 = vadd.f32 %v1044, %v1217
        %1219 = vmatprep.mubr.bf16.mxu0 0
        %1220 = vmatmul.mubr.bf16.gmra.mxu0 %v722
        %v1221 = vpop.f32.mrf.mxu0
        %v1222 = vadd.f32 %v1040, %v1221
        %v1223 = vpop.f32.mrf.mxu0
        %v1224 = vadd.f32 %v1044, %v1223
        %v1225 = vpop.f32.mrf.mxu0
        %v1226 = vadd.f32 %v1040, %v1225
        %v1227 = vpop.f32.mrf.mxu0
        %v1228 = vadd.f32 %v1044, %v1227
        %1229 = vmatprep.mubr.bf16.mxu0 0
        %1230 = vmatmul.mubr.bf16.gmra.mxu0 %v723
        %v1231 = vpop.f32.mrf.mxu0
        %v1232 = vadd.f32 %v1040, %v1231
        %v1233 = vpop.f32.mrf.mxu0
        %v1234 = vadd.f32 %v1044, %v1233
        %v1235 = vpop.f32.mrf.mxu0
        %v1236 = vadd.f32 %v1040, %v1235
        %v1237 = vpop.f32.mrf.mxu0
        %v1238 = vadd.f32 %v1044, %v1237
        %1239 = vdwg.mxu0
        %v1240 = vmax.f32 %v1162, 0.0
        %v1241 = vmax.f32 %v1164, 0.0
        %v1242 = vmax.f32 %v1166, 0.0
        %v1243 = vmax.f32 %v1168, 0.0
        %v1244 = vmax.f32 %v1172, 0.0
        %v1245 = vmax.f32 %v1174, 0.0
        %v1246 = vmax.f32 %v1176, 0.0
        %v1247 = vmax.f32 %v1178, 0.0
        %v1248 = vmax.f32 %v1182, 0.0
        %v1249 = vmax.f32 %v1184, 0.0
        %v1250 = vmax.f32 %v1186, 0.0
        %v1251 = vmax.f32 %v1188, 0.0
        %v1252 = vmax.f32 %v1192, 0.0
        %v1253 = vmax.f32 %v1194, 0.0
        %v1254 = vmax.f32 %v1196, 0.0
        %v1255 = vmax.f32 %v1198, 0.0
        %v1256 = vmax.f32 %v1202, 0.0
        %v1257 = vmax.f32 %v1204, 0.0
        %v1258 = vmax.f32 %v1206, 0.0
        %v1259 = vmax.f32 %v1208, 0.0
        %v1260 = vmax.f32 %v1212, 0.0
        %v1261 = vmax.f32 %v1214, 0.0
        %v1262 = vmax.f32 %v1216, 0.0
        %v1263 = vmax.f32 %v1218, 0.0
        %v1264 = vmax.f32 %v1222, 0.0
        %v1265 = vmax.f32 %v1224, 0.0
        %v1266 = vmax.f32 %v1226, 0.0
        %v1267 = vmax.f32 %v1228, 0.0
        %v1268 = vmax.f32 %v1232, 0.0
        %v1269 = vmax.f32 %v1234, 0.0
        %v1270 = vmax.f32 %v1236, 0.0
        %v1271 = vmax.f32 %v1238, 0.0
        %v1272 = vmax.f32 %v1240, %v1244
        %v1273 = vmax.f32 %v1242, %v1246
        %v1274 = vmax.f32 %v1272, %v1248
        %v1275 = vmax.f32 %v1273, %v1250
        %v1276 = vmax.f32 %v1274, %v1252
        %v1277 = vmax.f32 %v1275, %v1254
        %v1278 = vmax.f32 %v1276, %v1256
        %v1279 = vmax.f32 %v1277, %v1258
        %v1280 = vmax.f32 %v1278, %v1260
        %v1281 = vmax.f32 %v1279, %v1262
        %v1282 = vmax.f32 %v1280, %v1264
        %v1283 = vmax.f32 %v1281, %v1266
        %v1284 = vmax.f32 %v1282, %v1268
        %v1285 = vmax.f32 %v1283, %v1270
        %v1286 = vmax.f32 %v1284, %v1285
        %v1287 = vrot.slane %v1286, 4
        %v1288 = vmax.f32 %v1286, %v1287
        %v1289 = vrot.slane %v1288, 2
        %v1290 = vmax.f32 %v1288, %v1289
        %v1291 = vrot.slane %v1290, 1
        %v1292 = vmax.f32 %v1290, %v1291
        %v1293 = vmax.f32 %v1241, %v1245
        %v1294 = vmax.f32 %v1243, %v1247
        %v1295 = vmax.f32 %v1293, %v1249
        %v1296 = vmax.f32 %v1294, %v1251
        %v1297 = vmax.f32 %v1295, %v1253
        %v1298 = vmax.f32 %v1296, %v1255
        %v1299 = vmax.f32 %v1297, %v1257
        %v1300 = vmax.f32 %v1298, %v1259
        %v1301 = vmax.f32 %v1299, %v1261
        %v1302 = vmax.f32 %v1300, %v1263
        %v1303 = vmax.f32 %v1301, %v1265
        %v1304 = vmax.f32 %v1302, %v1267
        %v1305 = vmax.f32 %v1303, %v1269
        %v1306 = vmax.f32 %v1304, %v1271
        %v1307 = vmax.f32 %v1305, %v1306
        %v1308 = vrot.slane %v1307, 4
        %v1309 = vmax.f32 %v1307, %v1308
        %v1310 = vrot.slane %v1309, 2
        %v1311 = vmax.f32 %v1309, %v1310
        %v1312 = vrot.slane %v1311, 1
        %v1313 = vmax.f32 %v1311, %v1312
        %v1314 = vld [vmem:[#allocation2 + $0x10] sm:$0xff]
        %v1315 = vld [vmem:[#allocation2 + $0x30] sm:$0xff]
        %v1316 = vld [vmem:[#allocation2 + $0x50] sm:$0xff]
        %v1317 = vld [vmem:[#allocation2 + $0x70] sm:$0xff]
        %v1318 = vld [vmem:[#allocation2 + $0x90] sm:$0xff]
        %v1319 = vld [vmem:[#allocation2 + $0xb0] sm:$0xff]
        %v1320 = vld [vmem:[#allocation2 + $0xd0] sm:$0xff]
        %v1321 = vld [vmem:[#allocation2 + $0xf0] sm:$0xff]
        %v1322 = vld [vmem:[#allocation2 + $0x110] sm:$0xff]
        %v1323 = vld [vmem:[#allocation2 + $0x130] sm:$0xff]
        %v1324 = vld [vmem:[#allocation2 + $0x150] sm:$0xff]
        %v1325 = vld [vmem:[#allocation2 + $0x170] sm:$0xff]
        %v1326 = vld [vmem:[#allocation2 + $0x190] sm:$0xff]
        %v1327 = vld [vmem:[#allocation2 + $0x1b0] sm:$0xff]
        %v1328 = vld [vmem:[#allocation2 + $0x1d0] sm:$0xff]
        %v1329 = vld [vmem:[#allocation2 + $0x1f0] sm:$0xff]
        %v1330 = vld [vmem:[%s6 + $0x4] sm:$0x3]
        %v1332 = vlaneseq
        %v1333 = vshrl.u32 %v1332, 7
        %v1334 = vsub.s32 0, %v1333
        %v1335 = vrot.slane %v1330, %v1334
        %v1336 = vlaneseq
        %v1337 = vshrl.u32 %v1336, 7
        %v1338 = vsub.s32 1, %v1337
        %v1339 = vrot.slane %v1330, %v1338
        %v1358 = vunpack.c.l.b16 %v1314
        %v1359 = vunpack.c.h.b16 %v1314
        %v1360 = vunpack.c.l.b16 %v1315
        %v1361 = vunpack.c.h.b16 %v1315
        %v1362 = vunpack.c.l.b16 %v1316
        %v1363 = vunpack.c.h.b16 %v1316
        %v1364 = vunpack.c.l.b16 %v1317
        %v1365 = vunpack.c.h.b16 %v1317
        %v1366 = vunpack.c.l.b16 %v1318
        %v1367 = vunpack.c.h.b16 %v1318
        %v1368 = vunpack.c.l.b16 %v1319
        %v1369 = vunpack.c.h.b16 %v1319
        %v1370 = vunpack.c.l.b16 %v1320
        %v1371 = vunpack.c.h.b16 %v1320
        %v1372 = vunpack.c.l.b16 %v1321
        %v1373 = vunpack.c.h.b16 %v1321
        %v1374 = vunpack.c.l.b16 %v1322
        %v1375 = vunpack.c.h.b16 %v1322
        %v1376 = vunpack.c.l.b16 %v1323
        %v1377 = vunpack.c.h.b16 %v1323
        %v1378 = vunpack.c.l.b16 %v1324
        %v1379 = vunpack.c.h.b16 %v1324
        %v1380 = vunpack.c.l.b16 %v1325
        %v1381 = vunpack.c.h.b16 %v1325
        %v1382 = vunpack.c.l.b16 %v1326
        %v1383 = vunpack.c.h.b16 %v1326
        %v1384 = vunpack.c.l.b16 %v1327
        %v1385 = vunpack.c.h.b16 %v1327
        %v1386 = vunpack.c.l.b16 %v1328
        %v1387 = vunpack.c.h.b16 %v1328
        %v1388 = vunpack.c.l.b16 %v1329
        %v1389 = vunpack.c.h.b16 %v1329
        %v1390 = vpack.c.b16 %v1360, %v1358
        %v1391 = vpack.c.b16 %v1361, %v1359
        %v1392 = vpack.c.b16 %v1364, %v1362
        %v1393 = vpack.c.b16 %v1365, %v1363
        %v1394 = vpack.c.b16 %v1368, %v1366
        %v1395 = vpack.c.b16 %v1369, %v1367
        %v1396 = vpack.c.b16 %v1372, %v1370
        %v1397 = vpack.c.b16 %v1373, %v1371
        %v1398 = vpack.c.b16 %v1376, %v1374
        %v1399 = vpack.c.b16 %v1377, %v1375
        %v1400 = vpack.c.b16 %v1380, %v1378
        %v1401 = vpack.c.b16 %v1381, %v1379
        %v1402 = vpack.c.b16 %v1384, %v1382
        %v1403 = vpack.c.b16 %v1385, %v1383
        %v1404 = vpack.c.b16 %v1388, %v1386
        %v1405 = vpack.c.b16 %v1389, %v1387
        %1422 = vmatprep.subr.bf16.mxu0 %v1405
        %1423 = vmatpush1.bf16.msra.mxu0 %v1404
        %1424 = vmatprep.subr.bf16.mxu0 %v1403
        %1425 = vmatpush1.bf16.msra.mxu0 %v1402
        %1426 = vmatprep.subr.bf16.mxu0 %v1401
        %1427 = vmatpush1.bf16.msra.mxu0 %v1400
        %1428 = vmatprep.subr.bf16.mxu0 %v1399
        %1429 = vmatpush1.bf16.msra.mxu0 %v1398
        %1430 = vmatprep.subr.bf16.mxu0 %v1397
        %1431 = vmatpush1.bf16.msra.mxu0 %v1396
        %1432 = vmatprep.subr.bf16.mxu0 %v1395
        %1433 = vmatpush1.bf16.msra.mxu0 %v1394
        %1434 = vmatprep.subr.bf16.mxu0 %v1393
        %1435 = vmatpush1.bf16.msra.mxu0 %v1392
        %1436 = vmatprep.subr.bf16.mxu0 %v1391
        %1437 = vmatpush1.bf16.msra.mxu0 %v1390
        %1438 = vmatprep.subr.bf16.mxu0 0
        %1439 = vmatpush2.bf16.msra.mxu0 0
        %1440 = vmatprep.subr.bf16.mxu0 0
        %1441 = vmatpush2.bf16.msra.mxu0 0
        %1442 = vmatprep.subr.bf16.mxu0 0
        %1443 = vmatpush2.bf16.msra.mxu0 0
        %1444 = vmatprep.subr.bf16.mxu0 0
        %1445 = vmatpush2.bf16.msra.mxu0 0
        %1446 = vmatprep.subr.bf16.mxu0 0
        %1447 = vmatpush2.bf16.msra.mxu0 0
        %1448 = vmatprep.subr.bf16.mxu0 0
        %1449 = vmatpush2.bf16.msra.mxu0 0
        %1450 = vmatprep.subr.bf16.mxu0 0
        %1451 = vmatpush2.bf16.msra.mxu0 0
        %1452 = vmatprep.subr.bf16.mxu0 0
        %1453 = vmatpush2.bf16.msra.mxu0 0
        %1454 = vmatprep.mubr.bf16.mxu0 0
        %1455 = vmatmul.mubr.bf16.gmra.mxu0 %v716
        %v1456 = vpop.f32.mrf.mxu0
        %v1457 = vadd.f32 %v1335, %v1456
        %v1458 = vpop.f32.mrf.mxu0
        %v1459 = vadd.f32 %v1339, %v1458
        %v1460 = vpop.f32.mrf.mxu0
        %v1461 = vadd.f32 %v1335, %v1460
        %v1462 = vpop.f32.mrf.mxu0
        %v1463 = vadd.f32 %v1339, %v1462
        %1464 = vmatprep.mubr.bf16.mxu0 0
        %1465 = vmatmul.mubr.bf16.gmra.mxu0 %v717
        %v1466 = vpop.f32.mrf.mxu0
        %v1467 = vadd.f32 %v1335, %v1466
        %v1468 = vpop.f32.mrf.mxu0
        %v1469 = vadd.f32 %v1339, %v1468
        %v1470 = vpop.f32.mrf.mxu0
        %v1471 = vadd.f32 %v1335, %v1470
        %v1472 = vpop.f32.mrf.mxu0
        %v1473 = vadd.f32 %v1339, %v1472
        %1474 = vmatprep.mubr.bf16.mxu0 0
        %1475 = vmatmul.mubr.bf16.gmra.mxu0 %v718
        %v1476 = vpop.f32.mrf.mxu0
        %v1477 = vadd.f32 %v1335, %v1476
        %v1478 = vpop.f32.mrf.mxu0
        %v1479 = vadd.f32 %v1339, %v1478
        %v1480 = vpop.f32.mrf.mxu0
        %v1481 = vadd.f32 %v1335, %v1480
        %v1482 = vpop.f32.mrf.mxu0
        %v1483 = vadd.f32 %v1339, %v1482
        %1484 = vmatprep.mubr.bf16.mxu0 0
        %1485 = vmatmul.mubr.bf16.gmra.mxu0 %v719
        %v1486 = vpop.f32.mrf.mxu0
        %v1487 = vadd.f32 %v1335, %v1486
        %v1488 = vpop.f32.mrf.mxu0
        %v1489 = vadd.f32 %v1339, %v1488
        %v1490 = vpop.f32.mrf.mxu0
        %v1491 = vadd.f32 %v1335, %v1490
        %v1492 = vpop.f32.mrf.mxu0
        %v1493 = vadd.f32 %v1339, %v1492
        %1494 = vmatprep.mubr.bf16.mxu0 0
        %1495 = vmatmul.mubr.bf16.gmra.mxu0 %v720
        %v1496 = vpop.f32.mrf.mxu0
        %v1497 = vadd.f32 %v1335, %v1496
        %v1498 = vpop.f32.mrf.mxu0
        %v1499 = vadd.f32 %v1339, %v1498
        %v1500 = vpop.f32.mrf.mxu0
        %v1501 = vadd.f32 %v1335, %v1500
        %v1502 = vpop.f32.mrf.mxu0
        %v1503 = vadd.f32 %v1339, %v1502
        %1504 = vmatprep.mubr.bf16.mxu0 0
        %1505 = vmatmul.mubr.bf16.gmra.mxu0 %v721
        %v1506 = vpop.f32.mrf.mxu0
        %v1507 = vadd.f32 %v1335, %v1506
        %v1508 = vpop.f32.mrf.mxu0
        %v1509 = vadd.f32 %v1339, %v1508
        %v1510 = vpop.f32.mrf.mxu0
        %v1511 = vadd.f32 %v1335, %v1510
        %v1512 = vpop.f32.mrf.mxu0
        %v1513 = vadd.f32 %v1339, %v1512
        %1514 = vmatprep.mubr.bf16.mxu0 0
        %1515 = vmatmul.mubr.bf16.gmra.mxu0 %v722
        %v1516 = vpop.f32.mrf.mxu0
        %v1517 = vadd.f32 %v1335, %v1516
        %v1518 = vpop.f32.mrf.mxu0
        %v1519 = vadd.f32 %v1339, %v1518
        %v1520 = vpop.f32.mrf.mxu0
        %v1521 = vadd.f32 %v1335, %v1520
        %v1522 = vpop.f32.mrf.mxu0
        %v1523 = vadd.f32 %v1339, %v1522
        %1524 = vmatprep.mubr.bf16.mxu0 0
        %1525 = vmatmul.mubr.bf16.gmra.mxu0 %v723
        %v1526 = vpop.f32.mrf.mxu0
        %v1527 = vadd.f32 %v1335, %v1526
        %v1528 = vpop.f32.mrf.mxu0
        %v1529 = vadd.f32 %v1339, %v1528
        %v1530 = vpop.f32.mrf.mxu0
        %v1531 = vadd.f32 %v1335, %v1530
        %v1532 = vpop.f32.mrf.mxu0
        %v1533 = vadd.f32 %v1339, %v1532
        %1534 = vdwg.mxu0
        %v1535 = vmax.f32 %v1457, 0.0
        %v1536 = vmax.f32 %v1459, 0.0
        %v1537 = vmax.f32 %v1461, 0.0
        %v1538 = vmax.f32 %v1463, 0.0
        %v1539 = vmax.f32 %v1467, 0.0
        %v1540 = vmax.f32 %v1469, 0.0
        %v1541 = vmax.f32 %v1471, 0.0
        %v1542 = vmax.f32 %v1473, 0.0
        %v1543 = vmax.f32 %v1477, 0.0
        %v1544 = vmax.f32 %v1479, 0.0
        %v1545 = vmax.f32 %v1481, 0.0
        %v1546 = vmax.f32 %v1483, 0.0
        %v1547 = vmax.f32 %v1487, 0.0
        %v1548 = vmax.f32 %v1489, 0.0
        %v1549 = vmax.f32 %v1491, 0.0
        %v1550 = vmax.f32 %v1493, 0.0
        %v1551 = vmax.f32 %v1497, 0.0
        %v1552 = vmax.f32 %v1499, 0.0
        %v1553 = vmax.f32 %v1501, 0.0
        %v1554 = vmax.f32 %v1503, 0.0
        %v1555 = vmax.f32 %v1507, 0.0
        %v1556 = vmax.f32 %v1509, 0.0
        %v1557 = vmax.f32 %v1511, 0.0
        %v1558 = vmax.f32 %v1513, 0.0
        %v1559 = vmax.f32 %v1517, 0.0
        %v1560 = vmax.f32 %v1519, 0.0
        %v1561 = vmax.f32 %v1521, 0.0
        %v1562 = vmax.f32 %v1523, 0.0
        %v1563 = vmax.f32 %v1527, 0.0
        %v1564 = vmax.f32 %v1529, 0.0
        %v1565 = vmax.f32 %v1531, 0.0
        %v1566 = vmax.f32 %v1533, 0.0
        %v1567 = vmax.f32 %v1535, %v1539
        %v1568 = vmax.f32 %v1537, %v1541
        %v1569 = vmax.f32 %v1567, %v1543
        %v1570 = vmax.f32 %v1568, %v1545
        %v1571 = vmax.f32 %v1569, %v1547
        %v1572 = vmax.f32 %v1570, %v1549
        %v1573 = vmax.f32 %v1571, %v1551
        %v1574 = vmax.f32 %v1572, %v1553
        %v1575 = vmax.f32 %v1573, %v1555
        %v1576 = vmax.f32 %v1574, %v1557
        %v1577 = vmax.f32 %v1575, %v1559
        %v1578 = vmax.f32 %v1576, %v1561
        %v1579 = vmax.f32 %v1577, %v1563
        %v1580 = vmax.f32 %v1578, %v1565
        %v1581 = vmax.f32 %v1579, %v1580
        %v1582 = vrot.slane %v1581, 4
        %v1583 = vmax.f32 %v1581, %v1582
        %v1584 = vrot.slane %v1583, 2
        %v1585 = vmax.f32 %v1583, %v1584
        %v1586 = vrot.slane %v1585, 1
        %v1587 = vmax.f32 %v1585, %v1586
        %v1588 = vmax.f32 %v1536, %v1540
        %v1589 = vmax.f32 %v1538, %v1542
        %v1590 = vmax.f32 %v1588, %v1544
        %v1591 = vmax.f32 %v1589, %v1546
        %v1592 = vmax.f32 %v1590, %v1548
        %v1593 = vmax.f32 %v1591, %v1550
        %v1594 = vmax.f32 %v1592, %v1552
        %v1595 = vmax.f32 %v1593, %v1554
        %v1596 = vmax.f32 %v1594, %v1556
        %v1597 = vmax.f32 %v1595, %v1558
        %v1598 = vmax.f32 %v1596, %v1560
        %v1599 = vmax.f32 %v1597, %v1562
        %v1600 = vmax.f32 %v1598, %v1564
        %v1601 = vmax.f32 %v1599, %v1566
        %v1602 = vmax.f32 %v1600, %v1601
        %v1603 = vrot.slane %v1602, 4
        %v1604 = vmax.f32 %v1602, %v1603
        %v1605 = vrot.slane %v1604, 2
        %v1606 = vmax.f32 %v1604, %v1605
        %v1607 = vrot.slane %v1606, 1
        %v1608 = vmax.f32 %v1606, %v1607
        %v1609 = vld [vmem:[#allocation2 + $0x18] sm:$0xff]
        %v1610 = vld [vmem:[#allocation2 + $0x38] sm:$0xff]
        %v1611 = vld [vmem:[#allocation2 + $0x58] sm:$0xff]
        %v1612 = vld [vmem:[#allocation2 + $0x78] sm:$0xff]
        %v1613 = vld [vmem:[#allocation2 + $0x98] sm:$0xff]
        %v1614 = vld [vmem:[#allocation2 + $0xb8] sm:$0xff]
        %v1615 = vld [vmem:[#allocation2 + $0xd8] sm:$0xff]
        %v1616 = vld [vmem:[#allocation2 + $0xf8] sm:$0xff]
        %v1617 = vld [vmem:[#allocation2 + $0x118] sm:$0xff]
        %v1618 = vld [vmem:[#allocation2 + $0x138] sm:$0xff]
        %v1619 = vld [vmem:[#allocation2 + $0x158] sm:$0xff]
        %v1620 = vld [vmem:[#allocation2 + $0x178] sm:$0xff]
        %v1621 = vld [vmem:[#allocation2 + $0x198] sm:$0xff]
        %v1622 = vld [vmem:[#allocation2 + $0x1b8] sm:$0xff]
        %v1623 = vld [vmem:[#allocation2 + $0x1d8] sm:$0xff]
        %v1624 = vld [vmem:[#allocation2 + $0x1f8] sm:$0xff]
        %v1625 = vld [vmem:[%s6 + $0x6] sm:$0x3]
        %v1627 = vlaneseq
        %v1628 = vshrl.u32 %v1627, 7
        %v1629 = vsub.s32 0, %v1628
        %v1630 = vrot.slane %v1625, %v1629
        %v1631 = vlaneseq
        %v1632 = vshrl.u32 %v1631, 7
        %v1633 = vsub.s32 1, %v1632
        %v1634 = vrot.slane %v1625, %v1633
        %v1653 = vunpack.c.l.b16 %v1609
        %v1654 = vunpack.c.h.b16 %v1609
        %v1655 = vunpack.c.l.b16 %v1610
        %v1656 = vunpack.c.h.b16 %v1610
        %v1657 = vunpack.c.l.b16 %v1611
        %v1658 = vunpack.c.h.b16 %v1611
        %v1659 = vunpack.c.l.b16 %v1612
        %v1660 = vunpack.c.h.b16 %v1612
        %v1661 = vunpack.c.l.b16 %v1613
        %v1662 = vunpack.c.h.b16 %v1613
        %v1663 = vunpack.c.l.b16 %v1614
        %v1664 = vunpack.c.h.b16 %v1614
        %v1665 = vunpack.c.l.b16 %v1615
        %v1666 = vunpack.c.h.b16 %v1615
        %v1667 = vunpack.c.l.b16 %v1616
        %v1668 = vunpack.c.h.b16 %v1616
        %v1669 = vunpack.c.l.b16 %v1617
        %v1670 = vunpack.c.h.b16 %v1617
        %v1671 = vunpack.c.l.b16 %v1618
        %v1672 = vunpack.c.h.b16 %v1618
        %v1673 = vunpack.c.l.b16 %v1619
        %v1674 = vunpack.c.h.b16 %v1619
        %v1675 = vunpack.c.l.b16 %v1620
        %v1676 = vunpack.c.h.b16 %v1620
        %v1677 = vunpack.c.l.b16 %v1621
        %v1678 = vunpack.c.h.b16 %v1621
        %v1679 = vunpack.c.l.b16 %v1622
        %v1680 = vunpack.c.h.b16 %v1622
        %v1681 = vunpack.c.l.b16 %v1623
        %v1682 = vunpack.c.h.b16 %v1623
        %v1683 = vunpack.c.l.b16 %v1624
        %v1684 = vunpack.c.h.b16 %v1624
        %v1685 = vpack.c.b16 %v1655, %v1653
        %v1686 = vpack.c.b16 %v1656, %v1654
        %v1687 = vpack.c.b16 %v1659, %v1657
        %v1688 = vpack.c.b16 %v1660, %v1658
        %v1689 = vpack.c.b16 %v1663, %v1661
        %v1690 = vpack.c.b16 %v1664, %v1662
        %v1691 = vpack.c.b16 %v1667, %v1665
        %v1692 = vpack.c.b16 %v1668, %v1666
        %v1693 = vpack.c.b16 %v1671, %v1669
        %v1694 = vpack.c.b16 %v1672, %v1670
        %v1695 = vpack.c.b16 %v1675, %v1673
        %v1696 = vpack.c.b16 %v1676, %v1674
        %v1697 = vpack.c.b16 %v1679, %v1677
        %v1698 = vpack.c.b16 %v1680, %v1678
        %v1699 = vpack.c.b16 %v1683, %v1681
        %v1700 = vpack.c.b16 %v1684, %v1682
        %1717 = vmatprep.subr.bf16.mxu0 %v1700
        %1718 = vmatpush1.bf16.msra.mxu0 %v1699
        %1719 = vmatprep.subr.bf16.mxu0 %v1698
        %1720 = vmatpush1.bf16.msra.mxu0 %v1697
        %1721 = vmatprep.subr.bf16.mxu0 %v1696
        %1722 = vmatpush1.bf16.msra.mxu0 %v1695
        %1723 = vmatprep.subr.bf16.mxu0 %v1694
        %1724 = vmatpush1.bf16.msra.mxu0 %v1693
        %1725 = vmatprep.subr.bf16.mxu0 %v1692
        %1726 = vmatpush1.bf16.msra.mxu0 %v1691
        %1727 = vmatprep.subr.bf16.mxu0 %v1690
        %1728 = vmatpush1.bf16.msra.mxu0 %v1689
        %1729 = vmatprep.subr.bf16.mxu0 %v1688
        %1730 = vmatpush1.bf16.msra.mxu0 %v1687
        %1731 = vmatprep.subr.bf16.mxu0 %v1686
        %1732 = vmatpush1.bf16.msra.mxu0 %v1685
        %1733 = vmatprep.subr.bf16.mxu0 0
        %1734 = vmatpush2.bf16.msra.mxu0 0
        %1735 = vmatprep.subr.bf16.mxu0 0
        %1736 = vmatpush2.bf16.msra.mxu0 0
        %1737 = vmatprep.subr.bf16.mxu0 0
        %1738 = vmatpush2.bf16.msra.mxu0 0
        %1739 = vmatprep.subr.bf16.mxu0 0
        %1740 = vmatpush2.bf16.msra.mxu0 0
        %1741 = vmatprep.subr.bf16.mxu0 0
        %1742 = vmatpush2.bf16.msra.mxu0 0
        %1743 = vmatprep.subr.bf16.mxu0 0
        %1744 = vmatpush2.bf16.msra.mxu0 0
        %1745 = vmatprep.subr.bf16.mxu0 0
        %1746 = vmatpush2.bf16.msra.mxu0 0
        %1747 = vmatprep.subr.bf16.mxu0 0
        %1748 = vmatpush2.bf16.msra.mxu0 0
        %1749 = vmatprep.mubr.bf16.mxu0 0
        %1750 = vmatmul.mubr.bf16.gmra.mxu0 %v716
        %v1751 = vpop.f32.mrf.mxu0
        %v1752 = vadd.f32 %v1630, %v1751
        %v1753 = vpop.f32.mrf.mxu0
        %v1754 = vadd.f32 %v1634, %v1753
        %v1755 = vpop.f32.mrf.mxu0
        %v1756 = vadd.f32 %v1630, %v1755
        %v1757 = vpop.f32.mrf.mxu0
        %v1758 = vadd.f32 %v1634, %v1757
        %1759 = vmatprep.mubr.bf16.mxu0 0
        %1760 = vmatmul.mubr.bf16.gmra.mxu0 %v717
        %v1761 = vpop.f32.mrf.mxu0
        %v1762 = vadd.f32 %v1630, %v1761
        %v1763 = vpop.f32.mrf.mxu0
        %v1764 = vadd.f32 %v1634, %v1763
        %v1765 = vpop.f32.mrf.mxu0
        %v1766 = vadd.f32 %v1630, %v1765
        %v1767 = vpop.f32.mrf.mxu0
        %v1768 = vadd.f32 %v1634, %v1767
        %1769 = vmatprep.mubr.bf16.mxu0 0
        %1770 = vmatmul.mubr.bf16.gmra.mxu0 %v718
        %v1771 = vpop.f32.mrf.mxu0
        %v1772 = vadd.f32 %v1630, %v1771
        %v1773 = vpop.f32.mrf.mxu0
        %v1774 = vadd.f32 %v1634, %v1773
        %v1775 = vpop.f32.mrf.mxu0
        %v1776 = vadd.f32 %v1630, %v1775
        %v1777 = vpop.f32.mrf.mxu0
        %v1778 = vadd.f32 %v1634, %v1777
        %1779 = vmatprep.mubr.bf16.mxu0 0
        %1780 = vmatmul.mubr.bf16.gmra.mxu0 %v719
        %v1781 = vpop.f32.mrf.mxu0
        %v1782 = vadd.f32 %v1630, %v1781
        %v1783 = vpop.f32.mrf.mxu0
        %v1784 = vadd.f32 %v1634, %v1783
        %v1785 = vpop.f32.mrf.mxu0
        %v1786 = vadd.f32 %v1630, %v1785
        %v1787 = vpop.f32.mrf.mxu0
        %v1788 = vadd.f32 %v1634, %v1787
        %1789 = vmatprep.mubr.bf16.mxu0 0
        %1790 = vmatmul.mubr.bf16.gmra.mxu0 %v720
        %v1791 = vpop.f32.mrf.mxu0
        %v1792 = vadd.f32 %v1630, %v1791
        %v1793 = vpop.f32.mrf.mxu0
        %v1794 = vadd.f32 %v1634, %v1793
        %v1795 = vpop.f32.mrf.mxu0
        %v1796 = vadd.f32 %v1630, %v1795
        %v1797 = vpop.f32.mrf.mxu0
        %v1798 = vadd.f32 %v1634, %v1797
        %1799 = vmatprep.mubr.bf16.mxu0 0
        %1800 = vmatmul.mubr.bf16.gmra.mxu0 %v721
        %v1801 = vpop.f32.mrf.mxu0
        %v1802 = vadd.f32 %v1630, %v1801
        %v1803 = vpop.f32.mrf.mxu0
        %v1804 = vadd.f32 %v1634, %v1803
        %v1805 = vpop.f32.mrf.mxu0
        %v1806 = vadd.f32 %v1630, %v1805
        %v1807 = vpop.f32.mrf.mxu0
        %v1808 = vadd.f32 %v1634, %v1807
        %1809 = vmatprep.mubr.bf16.mxu0 0
        %1810 = vmatmul.mubr.bf16.gmra.mxu0 %v722
        %v1811 = vpop.f32.mrf.mxu0
        %v1812 = vadd.f32 %v1630, %v1811
        %v1813 = vpop.f32.mrf.mxu0
        %v1814 = vadd.f32 %v1634, %v1813
        %v1815 = vpop.f32.mrf.mxu0
        %v1816 = vadd.f32 %v1630, %v1815
        %v1817 = vpop.f32.mrf.mxu0
        %v1818 = vadd.f32 %v1634, %v1817
        %1819 = vmatprep.mubr.bf16.mxu0 0
        %1820 = vmatmul.mubr.bf16.gmra.mxu0 %v723
        %v1821 = vpop.f32.mrf.mxu0
        %v1822 = vadd.f32 %v1630, %v1821
        %v1823 = vpop.f32.mrf.mxu0
        %v1824 = vadd.f32 %v1634, %v1823
        %v1825 = vpop.f32.mrf.mxu0
        %v1826 = vadd.f32 %v1630, %v1825
        %v1827 = vpop.f32.mrf.mxu0
        %v1828 = vadd.f32 %v1634, %v1827
        %1829 = vdwg.mxu0
        %v1830 = vmax.f32 %v1752, 0.0
        %v1831 = vmax.f32 %v1754, 0.0
        %v1832 = vmax.f32 %v1756, 0.0
        %v1833 = vmax.f32 %v1758, 0.0
        %v1834 = vmax.f32 %v1762, 0.0
        %v1835 = vmax.f32 %v1764, 0.0
        %v1836 = vmax.f32 %v1766, 0.0
        %v1837 = vmax.f32 %v1768, 0.0
        %v1838 = vmax.f32 %v1772, 0.0
        %v1839 = vmax.f32 %v1774, 0.0
        %v1840 = vmax.f32 %v1776, 0.0
        %v1841 = vmax.f32 %v1778, 0.0
        %v1842 = vmax.f32 %v1782, 0.0
        %v1843 = vmax.f32 %v1784, 0.0
        %v1844 = vmax.f32 %v1786, 0.0
        %v1845 = vmax.f32 %v1788, 0.0
        %v1846 = vmax.f32 %v1792, 0.0
        %v1847 = vmax.f32 %v1794, 0.0
        %v1848 = vmax.f32 %v1796, 0.0
        %v1849 = vmax.f32 %v1798, 0.0
        %v1850 = vmax.f32 %v1802, 0.0
        %v1851 = vmax.f32 %v1804, 0.0
        %v1852 = vmax.f32 %v1806, 0.0
        %v1853 = vmax.f32 %v1808, 0.0
        %v1854 = vmax.f32 %v1812, 0.0
        %v1855 = vmax.f32 %v1814, 0.0
        %v1856 = vmax.f32 %v1816, 0.0
        %v1857 = vmax.f32 %v1818, 0.0
        %v1858 = vmax.f32 %v1822, 0.0
        %v1859 = vmax.f32 %v1824, 0.0
        %v1860 = vmax.f32 %v1826, 0.0
        %v1861 = vmax.f32 %v1828, 0.0
        %v1862 = vmax.f32 %v1830, %v1834
        %v1863 = vmax.f32 %v1832, %v1836
        %v1864 = vmax.f32 %v1862, %v1838
        %v1865 = vmax.f32 %v1863, %v1840
        %v1866 = vmax.f32 %v1864, %v1842
        %v1867 = vmax.f32 %v1865, %v1844
        %v1868 = vmax.f32 %v1866, %v1846
        %v1869 = vmax.f32 %v1867, %v1848
        %v1870 = vmax.f32 %v1868, %v1850
        %v1871 = vmax.f32 %v1869, %v1852
        %v1872 = vmax.f32 %v1870, %v1854
        %v1873 = vmax.f32 %v1871, %v1856
        %v1874 = vmax.f32 %v1872, %v1858
        %v1875 = vmax.f32 %v1873, %v1860
        %v1876 = vmax.f32 %v1874, %v1875
        %v1877 = vrot.slane %v1876, 4
        %v1878 = vmax.f32 %v1876, %v1877
        %v1879 = vrot.slane %v1878, 2
        %v1880 = vmax.f32 %v1878, %v1879
        %v1881 = vrot.slane %v1880, 1
        %v1882 = vmax.f32 %v1880, %v1881
        %v1883 = vmax.f32 %v1831, %v1835
        %v1884 = vmax.f32 %v1833, %v1837
        %v1885 = vmax.f32 %v1883, %v1839
        %v1886 = vmax.f32 %v1884, %v1841
        %v1887 = vmax.f32 %v1885, %v1843
        %v1888 = vmax.f32 %v1886, %v1845
        %v1889 = vmax.f32 %v1887, %v1847
        %v1890 = vmax.f32 %v1888, %v1849
        %v1891 = vmax.f32 %v1889, %v1851
        %v1892 = vmax.f32 %v1890, %v1853
        %v1893 = vmax.f32 %v1891, %v1855
        %v1894 = vmax.f32 %v1892, %v1857
        %v1895 = vmax.f32 %v1893, %v1859
        %v1896 = vmax.f32 %v1894, %v1861
        %v1897 = vmax.f32 %v1895, %v1896
        %v1898 = vrot.slane %v1897, 4
        %v1899 = vmax.f32 %v1897, %v1898
        %v1900 = vrot.slane %v1899, 2
        %v1901 = vmax.f32 %v1899, %v1900
        %v1902 = vrot.slane %v1901, 1
        %v1903 = vmax.f32 %v1901, %v1902
        %v1912 = vcombine.low %v997, %v1018
        %v1913 = vcombine.low %v1292, %v1313
        %v1914 = vcombine.low %v1587, %v1608
        %v1915 = vcombine.low %v1882, %v1903
        %v1917 = vunpack.c.l.s4 1966171168
        %v1918 = vunpack.c.0.s8 %v1917
        %v1919 = vlaneseq
        %v1920 = vshrl.u32 %v1919, 7
        %v1921 = vsub.s32 %v1918, %v1920
        %v1922 = vrot.slane %v1912, %v1921
        %v1924 = vunpack.c.l.s4 1966171168
        %v1925 = vunpack.c.0.s8 %v1924
        %v1926 = vlaneseq
        %v1927 = vshrl.u32 %v1926, 7
        %v1928 = vsub.s32 %v1925, %v1927
        %v1929 = vrot.slane %v1913, %v1928
        %v1931 = vunpack.c.l.s4 1966171168
        %v1932 = vunpack.c.0.s8 %v1931
        %v1933 = vlaneseq
        %v1934 = vshrl.u32 %v1933, 7
        %v1935 = vsub.s32 %v1932, %v1934
        %v1936 = vrot.slane %v1914, %v1935
        %v1938 = vunpack.c.l.s4 1966171168
        %v1939 = vunpack.c.0.s8 %v1938
        %v1940 = vlaneseq
        %v1941 = vshrl.u32 %v1940, 7
        %v1942 = vsub.s32 %v1939, %v1941
        %v1943 = vrot.slane %v1915, %v1942
        %v1944 = vcombine.low %v1922, %v1929
        %v1945 = vcombine.low %v1936, %v1943
        %v1947 = vunpack.c.l.s4 1966171168
        %v1948 = vunpack.c.0.s8 %v1947
        %v1949 = vlaneseq
        %v1950 = vshrl.u32 %v1949, 7
        %v1951 = vsub.s32 %v1948, %v1950
        %v1952 = vrot.slane %v1944, %v1951
        %v1954 = vunpack.c.l.s4 1966171168
        %v1955 = vunpack.c.0.s8 %v1954
        %v1956 = vlaneseq
        %v1957 = vshrl.u32 %v1956, 7
        %v1958 = vsub.s32 %v1955, %v1957
        %v1959 = vrot.slane %v1945, %v1958
        %v1960 = vcombine.low %v1952, %v1959
        %1962 = vst [vmem:[%s286] sm:$0xff] %v1960
        %s1963 = sand.u32 %s182, 1
        %s1964 = scalar_lea.sflag [#allocation4], %s1963
        %s1965 = sand.u32 %s182, 1
        %s1966 = smul.addr %s1965, 8
        %s1967 = scalar_lea.vmem [#allocation5], %s1966
        // Predicated region
        $region53: #{tpu_custom_call.1} parent=47 // pred_check
          %p1968 = pneg %p192
        $region54: #{tpu_custom_call.1} parent=47 // pred_check_branch
          %1970 = sbr.rel (%p1968) target = $region56
        $region55: #{tpu_custom_call.1} parent=47 // pred_region
          %s1972 = ssub.s32 128, 128
          %1973 = vsyncadd %s1964, %s1972
          %s1974 = smul.addr %s22, 8
          %s1975 = smul.addr %s1974, 16
          %s1976 = scalar_lea.hbm %s7, %s1975
          %s1978 = sshll.u32 %s1967, 4
          %s1979 = int_to_ptr.vmem [resolvable:$true] %s1978
          %1981 = dma.vmem_to_hbm [thread:$0]  %s1979, 128, %s1976, %s1964
        $region56: #{tpu_custom_call.1} parent=47 // pred_fallthru
          _
      $region48: #{tpu_custom_call.1} parent=5 // pred_fallthru
        _
      %p1982 = scmp.le.s32.totalorder 2, %s17
      // Predicated region
      $region57: #{tpu_custom_call.1} parent=5 // pred_check
        %p1983 = pneg %p1982
      $region58: #{tpu_custom_call.1} parent=5 // pred_check_branch
        %1985 = sbr.rel (%p1983) target = $region60
      $region59: #{tpu_custom_call.1} parent=5 // pred_region
        %s1986 = ssub.s32 %s17, 2
        // Predicated region
        $region61: #{tpu_custom_call.1} parent=59 // pred_check
          %p1987 = pneg %p198
        $region62: #{tpu_custom_call.1} parent=59 // pred_check_branch
          %1989 = sbr.rel (%p1987) target = $region64
        $region63: #{tpu_custom_call.1} parent=59 // pred_region
          %s1990 = sand.u32 %s183, 1
          %s1991 = scalar_lea.sflag [#allocation4], %s1990
          %s1992 = sand.u32 %s183, 1
          %s1993 = smul.addr %s1992, 8
          %s1994 = scalar_lea.vmem [#allocation5], %s1993
          %1995 = dma.done %s1991, 128
        $region64: #{tpu_custom_call.1} parent=59 // pred_fallthru
          _
      $region60: #{tpu_custom_call.1} parent=5 // pred_fallthru
        _
    $region6: #{tpu_custom_call.1} parent=1 // loop_footer
      %s21 = sadd.s32 1, %s17
    $region7: #{tpu_custom_call.1} parent=1 // loop_footer_branch
      %16 = sbr.rel target = $region3
    $region8: #{tpu_custom_call.1} parent=1 // loop_exit
      _
    %1996 = vsyncpa [#allocation3], 1
    %s1997 = scalar_lea.sflag [#allocation3], 1
    %1998 = vsyncpa %s1997, 1
    %1999 = vsyncpa [#allocation4], 1
    %s2000 = scalar_lea.sflag [#allocation4], 1
    %2001 = vsyncpa %s2000, 1

</llo_original>
